<compile_context>
chip_gen: v6e
topology: v6e:2x2x1
jax: 0.10.0
libtpu: 0.0.40
codegen_flags: <defaults>
</compile_context>

<pallas_src>
import jax
import jax.numpy as jnp
import numpy as np
from jax import lax
from jax.experimental import pallas as pl
from jax.experimental.pallas import tpu as pltpu

_NEG = -1e30              # finite masking sentinel (safer than float32.max / 2)
_KV_CHUNK_TARGET = 512    # flash-style KV tile target: scores stay (N, <=512) f32
_FF_CHUNK_TARGET = 1024   # FFN hidden tile target: (TB*N, <=1024) f32 intermediate


def _chunk_size(total, target):
    """Largest divisor of `total` that is <= target (static Python, trace time)."""
    if total <= target:
        return total
    for c in range(target, 0, -1):
        if total % c == 0:
            return c
    return total


def _layernorm(x, g, b, eps=1e-5):
    mu = jnp.mean(x, axis=-1, keepdims=True)
    var = jnp.mean((x - mu) ** 2, axis=-1, keepdims=True)
    return (x - mu) * jax.lax.rsqrt(var + eps) * g + b


def reward_model_kernel(
    xemb_ref, pmask_ref, kmask_ref,
    vecs_ref, wqkv_ref, wo_ref, w1_ref, w2_ref, wpred_ref,
    out_ref,
):
    x = xemb_ref[...].astype(jnp.float32)   # (TB, N, D) bf16 on the wire -> f32 here
    pm = pmask_ref[...]                     # (TB, N, 1) f32 prompt mask
    km = kmask_ref[...]                     # (TB, 1, N) f32 validity mask, lane-major
    TB, N, D = x.shape
    F = w1_ref.shape[1]
    scale = 1.0 / (D ** 0.5)
    tkv = _chunk_size(N, _KV_CHUNK_TARGET)
    tf = _chunk_size(F, _FF_CHUNK_TARGET)

    # merged (8, D) vector params: one DMA / one VMEM tile, sliced by row.
    vecs = vecs_ref[...]
    pe, re_ = vecs[0:1], vecs[1:2]
    ln1g, ln1b = vecs[2:3], vecs[3:4]
    ln2g, ln2b = vecs[4:5], vecs[5:6]
    lnfg, lnfb = vecs[6:7], vecs[7:8]

    # extra_embed = torch.where(prompt_mask[..., None], prompt_embed, response_embed)
    # NOTE: pm arrives as a float-cast bool; `> 0.5` reproduces the boolean select.
    h = x + jnp.where(pm > 0.5, pe, re_)                         # (TB, N, D)

    # --- transformer block (stand-in for TransformerWrapper embedding path) ---
    hn = _layernorm(h, ln1g, ln1b)
    hn2d = hn.reshape(TB * N, D).astype(jnp.bfloat16)
    # fused QKV projection: one (TB*N, D) x (D, 3D) MXU call, f32 accumulation.
    qkv = jnp.dot(hn2d, wqkv_ref[...], preferred_element_type=jnp.float32)
    q = (qkv[:, 0:D] * scale).reshape(TB, N, D).astype(jnp.bfloat16)   # 1/sqrt(D) folded
    k = qkv[:, D:2 * D].reshape(TB, N, D).astype(jnp.bfloat16)
    v = qkv[:, 2 * D:3 * D].reshape(TB, N, D).astype(jnp.bfloat16)

    # flash-style online softmax over KV chunks: never materialize a full (N, N) tile.
    # TODO(synk): for very large N, switch this static Python loop to lax.fori_loop with
    # VMEM scratch carries so live ranges stay bounded.
    m_i = jnp.full((TB, N, 1), _NEG, jnp.float32)
    l_i = jnp.zeros((TB, N, 1), jnp.float32)
    acc = jnp.zeros((TB, N, D), jnp.float32)
    for c in range(N // tkv):
        sl = slice(c * tkv, (c + 1) * tkv)
        k_c, v_c, km_c = k[:, sl, :], v[:, sl, :], km[:, :, sl]
        # batched QK^T: contract the last dims -> no materialized transpose.
        s = lax.dot_general(q, k_c, (((2,), (2,)), ((0,), (0,))),
                            preferred_element_type=jnp.float32)        # (TB, N, tkv)
        s = jnp.where(km_c > 0.5, s, _NEG)                             # key-padding mask
        m_new = jnp.maximum(m_i, jnp.max(s, axis=-1, keepdims=True))
        alpha = jnp.exp(m_i - m_new)
        p = jnp.exp(s - m_new)
        l_i = alpha * l_i + jnp.sum(p, axis=-1, keepdims=True)
        acc = alpha * acc + lax.dot_general(
            p.astype(jnp.bfloat16), v_c, (((2,), (1,)), ((0,), (0,))),
            preferred_element_type=jnp.float32)
        m_i = m_new
    attn = acc * pl.reciprocal(l_i, approx=True)                        # EUP slot

    h = h + jnp.dot(attn.reshape(TB * N, D).astype(jnp.bfloat16), wo_ref[...],
                    preferred_element_type=jnp.float32).reshape(TB, N, D)

    # FFN tiled over the hidden dim F: only (TB*N, tf) intermediates live at once.
    hn2 = _layernorm(h, ln2g, ln2b).reshape(TB * N, D).astype(jnp.bfloat16)
    ff_out = jnp.zeros((TB * N, D), jnp.float32)
    for c in range(F // tf):
        sl = slice(c * tf, (c + 1) * tf)
        ff_c = jax.nn.gelu(jnp.dot(hn2, w1_ref[:, sl],
                                   preferred_element_type=jnp.float32))
        ff_out = ff_out + jnp.dot(ff_c.astype(jnp.bfloat16), w2_ref[sl, :],
                                  preferred_element_type=jnp.float32)
    h = h + ff_out.reshape(TB, N, D)

    h = _layernorm(h, lnfg, lnfb)                 # final norm -> "embeds"

    # --- masked_mean(embeds, mask, dim=1) as an MXU contraction (lane-major mask) ---
    # TODO(synk): default matmul precision rounds h to bf16 in this contraction; use a
    # VPU reduction (or precision=HIGHEST) if bit-exact pooling is required.
    pooled = lax.dot_general(km, h, (((2,), (1,)), ((0,), (0,))),
                             preferred_element_type=jnp.float32)        # (TB, 1, D)
    denom = jnp.sum(km, axis=-1, keepdims=True)                         # (TB, 1, 1)
    pooled = pooled / jnp.maximum(denom, 1e-3)     # exact divide: it scales the reward
    pooled = jnp.where(denom == 0.0, 0.0, pooled).reshape(TB, D)

    # --- to_pred: Linear(dim, 1, bias=False) then Rearrange('... 1 -> ...') ---
    # VPU dot (pooled * w_pred row, lane reduce) -> no N=1 MXU matmul in the epilogue.
    pred = jnp.sum(pooled * wpred_ref[...], axis=-1, keepdims=True)     # (TB, 1)
    out_ref[...] = jnp.broadcast_to(pred.reshape(TB, 1, 1), out_ref.shape)


def prepare_params(params):
    """One-time preprocessing (hoisted out of the forward): fuse QKV, cast MXU weights
    to bf16, pre-cast the embedding table, merge the small (1, D) vector params and
    reshape the reward-head weight to a lane row. Per-forward XLA work is then just the
    embedding gather + mask casts."""
    D = params["emb"].shape[1]
    return {
        "emb_bf16": params["emb"].astype(jnp.bfloat16),
        "vecs": jnp.concatenate(
            [params["prompt_embed"], params["response_embed"],
             params["ln1_g"], params["ln1_b"],
             params["ln2_g"], params["ln2_b"],
             params["lnf_g"], params["lnf_b"]], axis=0).astype(jnp.float32),   # (8, D)
        "wqkv": jnp.concatenate(
            [params["wq"], params["wk"], params["wv"]], axis=1).astype(jnp.bfloat16),
        "wo": params["wo"].astype(jnp.bfloat16),
        "w1": params["w1"].astype(jnp.bfloat16),
        "w2": params["w2"].astype(jnp.bfloat16),
        "w_pred_row": params["w_pred"].reshape(1, D).astype(jnp.float32),      # (1, D)
    }


def _vmem_capacity_bytes():
    try:
        return int(pltpu.get_tpu_info().vmem_capacity_bytes)
    except Exception:
        return 64 * 2**20   # conservative per-TC figure (v7x)


@jax.jit
def reward_model_forward(prepared, token_ids, mask, prompt_mask):
    B, N = token_ids.shape
    D = prepared["emb_bf16"].shape[1]
    F = prepared["w1"].shape[1]

    x_emb = prepared["emb_bf16"][token_ids]                    # (B, N, D) bf16
    pmask_f = prompt_mask.astype(jnp.float32)[..., None]       # (B, N, 1)
    kmask_f = mask.astype(jnp.float32)[:, None, :]             # (B, 1, N) lane-major

    # batch rows per grid step: keep >= 2 grid steps so the "parallel" axis can be
    # sharded across both v7x TensorCores; otherwise fall back to the whole batch.
    tb_candidates = [t for t in (8, 4, 2, 1) if B % t == 0 and B // t >= 2]
    TB = tb_candidates[0] if tb_candidates else B

    tkv = _chunk_size(N, _KV_CHUNK_TARGET)
    tf = _chunk_size(F, _FF_CHUNK_TARGET)

    def wspec(shape):
        # constant block index across the batch grid -> single resident buffer.
        return pl.BlockSpec(shape, lambda b: (0,) * len(shape),
                            pipeline_mode=pl.Buffered(1))

    in_specs = [
        pl.BlockSpec((TB, N, D), lambda b: (b, 0, 0)),   # x_emb (bf16)
        pl.BlockSpec((TB, N, 1), lambda b: (b, 0, 0)),   # prompt mask
        pl.BlockSpec((TB, 1, N), lambda b: (b, 0, 0)),   # validity mask (lane-major)
        wspec((8, D)),                                   # merged vector params
        wspec((D, 3 * D)), wspec((D, D)),                # fused wqkv / wo
        wspec((D, F)), wspec((F, D)),                    # ffn w1 / w2
        wspec((1, D)),                                   # reward head row (f32)
    ]

    # VMEM budget: single-buffered resident weights (Buffered(1), no x2), double-buffered
    # activation/IO blocks, plus in-kernel temporaries; headroom, clamped to capacity.
    weight_bytes = (D * 3 * D + D * D + 2 * D * F) * 2 + (8 * D + D) * 4
    io_block_bytes = (TB * N * D * 2            # x bf16
                      + TB * N * 128 * 4        # prompt mask (lane-padded)
                      + TB * 8 * N * 4          # validity mask (sublane-padded)
                      + TB * 8 * 128 * 4)       # output slab
    interm_bytes = (TB * N * 3 * D * (4 + 2)    # qkv f32 + bf16 q/k/v
                    + TB * N * tkv * 4 * 2      # score chunk + probs
                    + TB * N * D * 4 * 6        # x/h/hn/acc/attn/ff_out residents
                    + TB * N * tf * 4 * 2)      # ffn chunk f32 + bf16 copy
    vmem_needed = weight_bytes + 2 * io_block_bytes + interm_bytes
    vmem_cap = _vmem_capacity_bytes()
    vmem_limit = int(min(int(0.9 * vmem_cap),
                         max(32 * 2**20, int(1.4 * vmem_needed))))

    out = pl.pallas_call(
        reward_model_kernel,
        out_shape=jax.ShapeDtypeStruct((B, 8, 128), jnp.float32),
        grid_spec=pltpu.PrefetchScalarGridSpec(
            num_scalar_prefetch=0,
            grid=(B // TB,),
            in_specs=in_specs,
            out_specs=pl.BlockSpec((TB, 8, 128), lambda b: (b, 0, 0)),
        ),
        compiler_params=pltpu.CompilerParams(
            dimension_semantics=("parallel",),
            vmem_limit_bytes=vmem_limit,
        ),
    )(
        x_emb, pmask_f, kmask_f,
        prepared["vecs"], prepared["wqkv"], prepared["wo"],
        prepared["w1"], prepared["w2"], prepared["w_pred_row"],
    )
    return out[:, 0, 0]   # squeeze the lane/sublane-dense slab -> shape (B,)


def reward_model_reference(params, token_ids, mask, prompt_mask):
    """Pure-JAX (f32) reference of the same forward semantics."""
    D = params["emb"].shape[1]
    x = params["emb"][token_ids]
    pm = prompt_mask[..., None]
    m = mask.astype(jnp.float32)[..., None]
    extra = jnp.where(pm, params["prompt_embed"][None], params["response_embed"][None])
    h = x + extra

    def ln(t, g, b, eps=1e-5):
        mu = jnp.mean(t, axis=-1, keepdims=True)
        var = jnp.mean((t - mu) ** 2, axis=-1, keepdims=True)
        return (t - mu) * jax.lax.rsqrt(var + eps) * g + b

    hn = ln(h, params["ln1_g"], params["ln1_b"])
    q, k, v = hn @ params["wq"], hn @ params["wk"], hn @ params["wv"]
    s = jnp.einsum("bqd,bkd->bqk", q, k) / (D ** 0.5)
    s = s + (jnp.swapaxes(m, 1, 2) - 1.0) * (float(jnp.finfo(jnp.float32).max) * 0.5)
    s = s - jnp.max(s, axis=-1, keepdims=True)
    p = jnp.exp(s)
    p = p / jnp.sum(p, axis=-1, keepdims=True)
    h = h + jnp.einsum("bqk,bkd->bqd", p, v) @ params["wo"]
    hn2 = ln(h, params["ln2_g"], params["ln2_b"])
    h = h + jax.nn.gelu(hn2 @ params["w1"]) @ params["w2"]
    h = ln(h, params["lnf_g"], params["lnf_b"])
    denom = jnp.sum(m, axis=1)
    pooled = jnp.sum(h * m, axis=1) / jnp.maximum(denom, 1e-3)
    pooled = jnp.where(denom == 0.0, 0.0, pooled)
    return (pooled @ params["w_pred"])[:, 0]


def init_params(key, vocab, D, F):
    ks = jax.random.split(key, 10)
    # NOTE: the module's __init__ zero-inits prompt/response embeds; deterministic
    # random values are used here so the where()-selection path is exercised.
    return {
        "emb": jax.random.normal(ks[0], (vocab, D), jnp.float32) * 0.02,
        "prompt_embed": jax.random.normal(ks[1], (1, D), jnp.float32) * 0.02,
        "response_embed": jax.random.normal(ks[2], (1, D), jnp.float32) * 0.02,
        "ln1_g": jnp.ones((1, D), jnp.float32), "ln1_b": jnp.zeros((1, D), jnp.float32),
        "wq": jax.random.normal(ks[3], (D, D), jnp.float32) * 0.05,
        "wk": jax.random.normal(ks[4], (D, D), jnp.float32) * 0.05,
        "wv": jax.random.normal(ks[5], (D, D), jnp.float32) * 0.05,
        "wo": jax.random.normal(ks[6], (D, D), jnp.float32) * 0.05,
        "ln2_g": jnp.ones((1, D), jnp.float32), "ln2_b": jnp.zeros((1, D), jnp.float32),
        "w1": jax.random.normal(ks[7], (D, F), jnp.float32) * 0.05,
        "w2": jax.random.normal(ks[8], (F, D), jnp.float32) * 0.05,
        "lnf_g": jnp.ones((1, D), jnp.float32), "lnf_b": jnp.zeros((1, D), jnp.float32),
        "w_pred": jax.random.normal(ks[9], (D, 1), jnp.float32) * 0.05,
    }


if __name__ == "__main__":
    B, N, D, F, V = 2, 8, 32, 64, 64
    key = jax.random.PRNGKey(0)
    k_param, k_tok = jax.random.split(key)

    params = init_params(k_param, V, D, F)
    prepared = prepare_params(params)          # one-time weight fuse / cast / merge
    token_ids = jax.random.randint(k_tok, (B, N), 0, V, dtype=jnp.int32)
    # mask: batch 0 fully valid, batch 1 has 2 padding tokens at the end
    mask = jnp.array([[1, 1, 1, 1, 1, 1, 1, 1],
                      [1, 1, 1, 1, 1, 1, 0, 0]], dtype=bool)
    # prompt_mask: first part of the sequence is prompt, rest is response
    prompt_mask = jnp.array([[1, 1, 1, 1, 0, 0, 0, 0],
                             [1, 1, 1, 0, 0, 0, 0, 0]], dtype=bool)

    pred = jax.block_until_ready(
        reward_model_forward(prepared, token_ids, mask, prompt_mask))
    ref = jax.block_until_ready(
        reward_model_reference(params, token_ids, mask, prompt_mask))

    np.testing.assert_allclose(np.asarray(pred), np.asarray(ref), rtol=3e-2, atol=3e-2)
    assert pred.shape == (B,)
    print("KERNEL_OK")
</pallas_src>

<mosaic_0001>
module attributes {stable_mosaic.version = 11 : i64} {
  func.func @reward_model_kernel(%arg0: i32, %arg1: memref<1x8x32xbf16, #tpu.memory_space<vmem>>, %arg2: memref<1x8x1xf32, #tpu.memory_space<vmem>>, %arg3: memref<1x1x8xf32, #tpu.memory_space<vmem>>, %arg4: memref<8x32xf32, #tpu.memory_space<vmem>>, %arg5: memref<32x96xbf16, #tpu.memory_space<vmem>>, %arg6: memref<32x32xbf16, #tpu.memory_space<vmem>>, %arg7: memref<32x64xbf16, #tpu.memory_space<vmem>>, %arg8: memref<64x32xbf16, #tpu.memory_space<vmem>>, %arg9: memref<1x32xf32, #tpu.memory_space<vmem>>, %arg10: memref<1x8x128xf32, #tpu.memory_space<vmem>>) attributes {dimension_semantics = [#tpu.dimension_semantics<parallel>], iteration_bounds = array<i64: 2>, scalar_prefetch = 0 : i64, scratch_operands = 0 : i64, tpu.core_type = #tpu.core_type<tc>, window_params = [{transform_indices = @transform_0, window_bounds = array<i64: 1, 8, 32>}, {transform_indices = @transform_1, window_bounds = array<i64: 1, 8, 1>}, {transform_indices = @transform_2, window_bounds = array<i64: 1, 1, 8>}, {pipeline_mode = #tpu.pipeline_mode<synchronous>, transform_indices = @transform_3, window_bounds = array<i64: 8, 32>}, {pipeline_mode = #tpu.pipeline_mode<synchronous>, transform_indices = @transform_4, window_bounds = array<i64: 32, 96>}, {pipeline_mode = #tpu.pipeline_mode<synchronous>, transform_indices = @transform_5, window_bounds = array<i64: 32, 32>}, {pipeline_mode = #tpu.pipeline_mode<synchronous>, transform_indices = @transform_6, window_bounds = array<i64: 32, 64>}, {pipeline_mode = #tpu.pipeline_mode<synchronous>, transform_indices = @transform_7, window_bounds = array<i64: 64, 32>}, {pipeline_mode = #tpu.pipeline_mode<synchronous>, transform_indices = @transform_8, window_bounds = array<i64: 1, 32>}, {transform_indices = @transform_9, window_bounds = array<i64: 1, 8, 128>}]} {
    %c0 = arith.constant 0 : index
    %c0_0 = arith.constant 0 : index
    %c0_1 = arith.constant 0 : index
    %0 = vector.load %arg1[%c0, %c0_0, %c0_1] : memref<1x8x32xbf16, #tpu.memory_space<vmem>>, vector<1x8x32xbf16>
    %1 = arith.extf %0 : vector<1x8x32xbf16> to vector<1x8x32xf32>
    %c0_2 = arith.constant 0 : index
    %c0_3 = arith.constant 0 : index
    %c0_4 = arith.constant 0 : index
    %2 = vector.load %arg2[%c0_2, %c0_3, %c0_4] : memref<1x8x1xf32, #tpu.memory_space<vmem>>, vector<1x8x1xf32>
    %c0_5 = arith.constant 0 : index
    %c0_6 = arith.constant 0 : index
    %c0_7 = arith.constant 0 : index
    %3 = vector.load %arg3[%c0_5, %c0_6, %c0_7] : memref<1x1x8xf32, #tpu.memory_space<vmem>>, vector<1x1x8xf32>
    %c0_8 = arith.constant 0 : index
    %c0_9 = arith.constant 0 : index
    %4 = vector.load %arg4[%c0_8, %c0_9] : memref<8x32xf32, #tpu.memory_space<vmem>>, vector<8x32xf32>
    %5 = vector.extract_strided_slice %4 {offsets = [0, 0], sizes = [1, 32], strides = [1, 1]} : vector<8x32xf32> to vector<1x32xf32>
    %6 = vector.extract_strided_slice %4 {offsets = [1, 0], sizes = [1, 32], strides = [1, 1]} : vector<8x32xf32> to vector<1x32xf32>
    %7 = vector.extract_strided_slice %4 {offsets = [2, 0], sizes = [1, 32], strides = [1, 1]} : vector<8x32xf32> to vector<1x32xf32>
    %8 = vector.extract_strided_slice %4 {offsets = [3, 0], sizes = [1, 32], strides = [1, 1]} : vector<8x32xf32> to vector<1x32xf32>
    %9 = vector.extract_strided_slice %4 {offsets = [4, 0], sizes = [1, 32], strides = [1, 1]} : vector<8x32xf32> to vector<1x32xf32>
    %10 = vector.extract_strided_slice %4 {offsets = [5, 0], sizes = [1, 32], strides = [1, 1]} : vector<8x32xf32> to vector<1x32xf32>
    %11 = vector.extract_strided_slice %4 {offsets = [6, 0], sizes = [1, 32], strides = [1, 1]} : vector<8x32xf32> to vector<1x32xf32>
    %12 = vector.extract_strided_slice %4 {offsets = [7, 0], sizes = [1, 32], strides = [1, 1]} : vector<8x32xf32> to vector<1x32xf32>
    %cst = arith.constant 5.000000e-01 : f32
    %13 = vector.broadcast %cst : f32 to vector<1x8x1xf32>
    %14 = arith.cmpf ogt, %2, %13 : vector<1x8x1xf32>
    %15 = vector.shape_cast %14 : vector<1x8x1xi1> to vector<1x8x1xi1>
    %16 = vector.broadcast %15 : vector<1x8x1xi1> to vector<1x8x32xi1>
    %17 = vector.shape_cast %5 : vector<1x32xf32> to vector<1x1x32xf32>
    %18 = vector.broadcast %17 : vector<1x1x32xf32> to vector<1x8x32xf32>
    %19 = vector.shape_cast %6 : vector<1x32xf32> to vector<1x1x32xf32>
    %20 = vector.broadcast %19 : vector<1x1x32xf32> to vector<1x8x32xf32>
    %21 = arith.select %16, %18, %20 : vector<1x8x32xi1>, vector<1x8x32xf32>
    %22 = arith.addf %1, %21 : vector<1x8x32xf32>
    %cst_10 = arith.constant dense<0.000000e+00> : vector<1x8xf32>
    %23 = vector.multi_reduction <add>, %22, %cst_10 [2] : vector<1x8x32xf32> to vector<1x8xf32>
    %24 = vector.shape_cast %23 : vector<1x8xf32> to vector<1x8x1xf32>
    %cst_11 = arith.constant 3.200000e+01 : f32
    %25 = vector.broadcast %cst_11 : f32 to vector<1x8x1xf32>
    %26 = arith.divf %24, %25 : vector<1x8x1xf32>
    %27 = vector.broadcast %26 : vector<1x8x1xf32> to vector<1x8x32xf32>
    %28 = arith.subf %22, %27 : vector<1x8x32xf32>
    %29 = arith.mulf %28, %28 : vector<1x8x32xf32>
    %cst_12 = arith.constant dense<0.000000e+00> : vector<1x8xf32>
    %30 = vector.multi_reduction <add>, %29, %cst_12 [2] : vector<1x8x32xf32> to vector<1x8xf32>
    %31 = vector.shape_cast %30 : vector<1x8xf32> to vector<1x8x1xf32>
    %cst_13 = arith.constant 3.200000e+01 : f32
    %32 = vector.broadcast %cst_13 : f32 to vector<1x8x1xf32>
    %33 = arith.divf %31, %32 : vector<1x8x1xf32>
    %34 = vector.broadcast %26 : vector<1x8x1xf32> to vector<1x8x32xf32>
    %35 = arith.subf %22, %34 : vector<1x8x32xf32>
    %cst_14 = arith.constant 9.99999974E-6 : f32
    %36 = vector.broadcast %cst_14 : f32 to vector<1x8x1xf32>
    %37 = arith.addf %33, %36 : vector<1x8x1xf32>
    %38 = math.rsqrt %37 : vector<1x8x1xf32>
    %39 = vector.broadcast %38 : vector<1x8x1xf32> to vector<1x8x32xf32>
    %40 = arith.mulf %35, %39 : vector<1x8x32xf32>
    %41 = vector.shape_cast %7 : vector<1x32xf32> to vector<1x1x32xf32>
    %42 = vector.broadcast %41 : vector<1x1x32xf32> to vector<1x8x32xf32>
    %43 = arith.mulf %40, %42 : vector<1x8x32xf32>
    %44 = vector.shape_cast %8 : vector<1x32xf32> to vector<1x1x32xf32>
    %45 = vector.broadcast %44 : vector<1x1x32xf32> to vector<1x8x32xf32>
    %46 = arith.addf %43, %45 : vector<1x8x32xf32>
    %47 = vector.shape_cast %46 : vector<1x8x32xf32> to vector<8x32xf32>
    %48 = arith.truncf %47 : vector<8x32xf32> to vector<8x32xbf16>
    %c0_15 = arith.constant 0 : index
    %c0_16 = arith.constant 0 : index
    %49 = vector.load %arg5[%c0_15, %c0_16] : memref<32x96xbf16, #tpu.memory_space<vmem>>, vector<32x96xbf16>
    %cst_17 = arith.constant dense<0.000000e+00> : vector<8x96xf32>
    %50 = tpu.matmul %48, %49, %cst_17 {dimension_numbers = #tpu.dot_dimension_numbers<[1], [0], [0], [1], [0, 0, 1, 1], [], []>} : vector<8x32xbf16>, vector<32x96xbf16>, vector<8x96xf32> -> vector<8x96xf32>
    %51 = vector.extract_strided_slice %50 {offsets = [0, 0], sizes = [8, 32], strides = [1, 1]} : vector<8x96xf32> to vector<8x32xf32>
    %cst_18 = arith.constant 0.176776692 : f32
    %52 = vector.broadcast %cst_18 : f32 to vector<8x32xf32>
    %53 = arith.mulf %51, %52 : vector<8x32xf32>
    %54 = vector.shape_cast %53 : vector<8x32xf32> to vector<1x8x32xf32>
    %55 = arith.truncf %54 : vector<1x8x32xf32> to vector<1x8x32xbf16>
    %56 = vector.extract_strided_slice %50 {offsets = [0, 32], sizes = [8, 32], strides = [1, 1]} : vector<8x96xf32> to vector<8x32xf32>
    %57 = vector.shape_cast %56 : vector<8x32xf32> to vector<1x8x32xf32>
    %58 = arith.truncf %57 : vector<1x8x32xf32> to vector<1x8x32xbf16>
    %59 = vector.extract_strided_slice %50 {offsets = [0, 64], sizes = [8, 32], strides = [1, 1]} : vector<8x96xf32> to vector<8x32xf32>
    %60 = vector.shape_cast %59 : vector<8x32xf32> to vector<1x8x32xf32>
    %61 = arith.truncf %60 : vector<1x8x32xf32> to vector<1x8x32xbf16>
    %cst_19 = arith.constant -1.000000e+30 : f32
    %62 = vector.broadcast %cst_19 : f32 to vector<1x8x1xf32>
    %cst_20 = arith.constant 0.000000e+00 : f32
    %63 = vector.broadcast %cst_20 : f32 to vector<1x8x1xf32>
    %cst_21 = arith.constant 0.000000e+00 : f32
    %64 = vector.broadcast %cst_21 : f32 to vector<1x8x32xf32>
    %cst_22 = arith.constant dense<0.000000e+00> : vector<1x8x8xf32>
    %65 = tpu.matmul %55, %58, %cst_22 {dimension_numbers = #tpu.dot_dimension_numbers<[2], [2], [1], [1], [0, 0, 0, 1, 1, 1], [0], [0]>} : vector<1x8x32xbf16>, vector<1x8x32xbf16>, vector<1x8x8xf32> -> vector<1x8x8xf32>
    %cst_23 = arith.constant 5.000000e-01 : f32
    %66 = vector.broadcast %cst_23 : f32 to vector<1x1x8xf32>
    %67 = arith.cmpf ogt, %3, %66 : vector<1x1x8xf32>
    %cst_24 = arith.constant -1.000000e+30 : f32
    %68 = vector.shape_cast %67 : vector<1x1x8xi1> to vector<1x1x8xi1>
    %69 = vector.broadcast %68 : vector<1x1x8xi1> to vector<1x8x8xi1>
    %70 = vector.broadcast %cst_24 : f32 to vector<1x8x8xf32>
    %71 = arith.select %69, %65, %70 : vector<1x8x8xi1>, vector<1x8x8xf32>
    %cst_25 = arith.constant dense<0xFF800000> : vector<1x8xf32>
    %72 = vector.multi_reduction <maximumf>, %71, %cst_25 [2] : vector<1x8x8xf32> to vector<1x8xf32>
    %73 = vector.shape_cast %72 : vector<1x8xf32> to vector<1x8x1xf32>
    %74 = arith.maximumf %62, %73 : vector<1x8x1xf32>
    %75 = arith.subf %62, %74 : vector<1x8x1xf32>
    %76 = math.exp %75 : vector<1x8x1xf32>
    %77 = vector.broadcast %74 : vector<1x8x1xf32> to vector<1x8x8xf32>
    %78 = arith.subf %71, %77 : vector<1x8x8xf32>
    %79 = math.exp %78 : vector<1x8x8xf32>
    %80 = arith.mulf %76, %63 : vector<1x8x1xf32>
    %cst_26 = arith.constant dense<0.000000e+00> : vector<1x8xf32>
    %81 = vector.multi_reduction <add>, %79, %cst_26 [2] : vector<1x8x8xf32> to vector<1x8xf32>
    %82 = vector.shape_cast %81 : vector<1x8xf32> to vector<1x8x1xf32>
    %83 = arith.addf %80, %82 : vector<1x8x1xf32>
    %84 = vector.broadcast %76 : vector<1x8x1xf32> to vector<1x8x32xf32>
    %85 = arith.mulf %84, %64 : vector<1x8x32xf32>
    %86 = arith.truncf %79 : vector<1x8x8xf32> to vector<1x8x8xbf16>
    %cst_27 = arith.constant dense<0.000000e+00> : vector<1x8x32xf32>
    %87 = tpu.matmul %86, %61, %cst_27 {dimension_numbers = #tpu.dot_dimension_numbers<[2], [1], [1], [2], [0, 0, 0, 1, 1, 2], [0], [0]>} : vector<1x8x8xbf16>, vector<1x8x32xbf16>, vector<1x8x32xf32> -> vector<1x8x32xf32>
    %88 = arith.addf %85, %87 : vector<1x8x32xf32>
    %89 = tpu.reciprocal %83 {approx = true} : vector<1x8x1xf32> -> vector<1x8x1xf32>
    %90 = vector.broadcast %89 : vector<1x8x1xf32> to vector<1x8x32xf32>
    %91 = arith.mulf %88, %90 : vector<1x8x32xf32>
    %92 = vector.shape_cast %91 : vector<1x8x32xf32> to vector<8x32xf32>
    %93 = arith.truncf %92 : vector<8x32xf32> to vector<8x32xbf16>
    %c0_28 = arith.constant 0 : index
    %c0_29 = arith.constant 0 : index
    %94 = vector.load %arg6[%c0_28, %c0_29] : memref<32x32xbf16, #tpu.memory_space<vmem>>, vector<32x32xbf16>
    %cst_30 = arith.constant dense<0.000000e+00> : vector<8x32xf32>
    %95 = tpu.matmul %93, %94, %cst_30 {dimension_numbers = #tpu.dot_dimension_numbers<[1], [0], [0], [1], [0, 0, 1, 1], [], []>} : vector<8x32xbf16>, vector<32x32xbf16>, vector<8x32xf32> -> vector<8x32xf32>
    %96 = vector.shape_cast %95 : vector<8x32xf32> to vector<1x8x32xf32>
    %97 = arith.addf %22, %96 : vector<1x8x32xf32>
    %cst_31 = arith.constant dense<0.000000e+00> : vector<1x8xf32>
    %98 = vector.multi_reduction <add>, %97, %cst_31 [2] : vector<1x8x32xf32> to vector<1x8xf32>
    %99 = vector.shape_cast %98 : vector<1x8xf32> to vector<1x8x1xf32>
    %cst_32 = arith.constant 3.200000e+01 : f32
    %100 = vector.broadcast %cst_32 : f32 to vector<1x8x1xf32>
    %101 = arith.divf %99, %100 : vector<1x8x1xf32>
    %102 = vector.broadcast %101 : vector<1x8x1xf32> to vector<1x8x32xf32>
    %103 = arith.subf %97, %102 : vector<1x8x32xf32>
    %104 = arith.mulf %103, %103 : vector<1x8x32xf32>
    %cst_33 = arith.constant dense<0.000000e+00> : vector<1x8xf32>
    %105 = vector.multi_reduction <add>, %104, %cst_33 [2] : vector<1x8x32xf32> to vector<1x8xf32>
    %106 = vector.shape_cast %105 : vector<1x8xf32> to vector<1x8x1xf32>
    %cst_34 = arith.constant 3.200000e+01 : f32
    %107 = vector.broadcast %cst_34 : f32 to vector<1x8x1xf32>
    %108 = arith.divf %106, %107 : vector<1x8x1xf32>
    %109 = vector.broadcast %101 : vector<1x8x1xf32> to vector<1x8x32xf32>
    %110 = arith.subf %97, %109 : vector<1x8x32xf32>
    %cst_35 = arith.constant 9.99999974E-6 : f32
    %111 = vector.broadcast %cst_35 : f32 to vector<1x8x1xf32>
    %112 = arith.addf %108, %111 : vector<1x8x1xf32>
    %113 = math.rsqrt %112 : vector<1x8x1xf32>
    %114 = vector.broadcast %113 : vector<1x8x1xf32> to vector<1x8x32xf32>
    %115 = arith.mulf %110, %114 : vector<1x8x32xf32>
    %116 = vector.shape_cast %9 : vector<1x32xf32> to vector<1x1x32xf32>
    %117 = vector.broadcast %116 : vector<1x1x32xf32> to vector<1x8x32xf32>
    %118 = arith.mulf %115, %117 : vector<1x8x32xf32>
    %119 = vector.shape_cast %10 : vector<1x32xf32> to vector<1x1x32xf32>
    %120 = vector.broadcast %119 : vector<1x1x32xf32> to vector<1x8x32xf32>
    %121 = arith.addf %118, %120 : vector<1x8x32xf32>
    %122 = vector.shape_cast %121 : vector<1x8x32xf32> to vector<8x32xf32>
    %123 = arith.truncf %122 : vector<8x32xf32> to vector<8x32xbf16>
    %cst_36 = arith.constant 0.000000e+00 : f32
    %124 = vector.broadcast %cst_36 : f32 to vector<8x32xf32>
    %c0_37 = arith.constant 0 : index
    %c0_38 = arith.constant 0 : index
    %125 = vector.load %arg7[%c0_37, %c0_38] : memref<32x64xbf16, #tpu.memory_space<vmem>>, vector<32x64xbf16>
    %cst_39 = arith.constant dense<0.000000e+00> : vector<8x64xf32>
    %126 = tpu.matmul %123, %125, %cst_39 {dimension_numbers = #tpu.dot_dimension_numbers<[1], [0], [0], [1], [0, 0, 1, 1], [], []>} : vector<8x32xbf16>, vector<32x64xbf16>, vector<8x64xf32> -> vector<8x64xf32>
    %127 = arith.mulf %126, %126 : vector<8x64xf32>
    %128 = arith.mulf %126, %127 : vector<8x64xf32>
    %cst_40 = arith.constant 4.471500e-02 : f32
    %129 = vector.broadcast %cst_40 : f32 to vector<8x64xf32>
    %130 = arith.mulf %129, %128 : vector<8x64xf32>
    %131 = arith.addf %126, %130 : vector<8x64xf32>
    %cst_41 = arith.constant 0.797884583 : f32
    %132 = vector.broadcast %cst_41 : f32 to vector<8x64xf32>
    %133 = arith.mulf %132, %131 : vector<8x64xf32>
    %134 = math.tanh %133 : vector<8x64xf32>
    %cst_42 = arith.constant 1.000000e+00 : f32
    %135 = vector.broadcast %cst_42 : f32 to vector<8x64xf32>
    %136 = arith.addf %135, %134 : vector<8x64xf32>
    %cst_43 = arith.constant 5.000000e-01 : f32
    %137 = vector.broadcast %cst_43 : f32 to vector<8x64xf32>
    %138 = arith.mulf %137, %136 : vector<8x64xf32>
    %139 = arith.mulf %126, %138 : vector<8x64xf32>
    %140 = arith.truncf %139 : vector<8x64xf32> to vector<8x64xbf16>
    %c0_44 = arith.constant 0 : index
    %c0_45 = arith.constant 0 : index
    %141 = vector.load %arg8[%c0_44, %c0_45] : memref<64x32xbf16, #tpu.memory_space<vmem>>, vector<64x32xbf16>
    %cst_46 = arith.constant dense<0.000000e+00> : vector<8x32xf32>
    %142 = tpu.matmul %140, %141, %cst_46 {dimension_numbers = #tpu.dot_dimension_numbers<[1], [0], [0], [1], [0, 0, 1, 1], [], []>} : vector<8x64xbf16>, vector<64x32xbf16>, vector<8x32xf32> -> vector<8x32xf32>
    %143 = arith.addf %124, %142 : vector<8x32xf32>
    %144 = vector.shape_cast %143 : vector<8x32xf32> to vector<1x8x32xf32>
    %145 = arith.addf %97, %144 : vector<1x8x32xf32>
    %cst_47 = arith.constant dense<0.000000e+00> : vector<1x8xf32>
    %146 = vector.multi_reduction <add>, %145, %cst_47 [2] : vector<1x8x32xf32> to vector<1x8xf32>
    %147 = vector.shape_cast %146 : vector<1x8xf32> to vector<1x8x1xf32>
    %cst_48 = arith.constant 3.200000e+01 : f32
    %148 = vector.broadcast %cst_48 : f32 to vector<1x8x1xf32>
    %149 = arith.divf %147, %148 : vector<1x8x1xf32>
    %150 = vector.broadcast %149 : vector<1x8x1xf32> to vector<1x8x32xf32>
    %151 = arith.subf %145, %150 : vector<1x8x32xf32>
    %152 = arith.mulf %151, %151 : vector<1x8x32xf32>
    %cst_49 = arith.constant dense<0.000000e+00> : vector<1x8xf32>
    %153 = vector.multi_reduction <add>, %152, %cst_49 [2] : vector<1x8x32xf32> to vector<1x8xf32>
    %154 = vector.shape_cast %153 : vector<1x8xf32> to vector<1x8x1xf32>
    %cst_50 = arith.constant 3.200000e+01 : f32
    %155 = vector.broadcast %cst_50 : f32 to vector<1x8x1xf32>
    %156 = arith.divf %154, %155 : vector<1x8x1xf32>
    %157 = vector.broadcast %149 : vector<1x8x1xf32> to vector<1x8x32xf32>
    %158 = arith.subf %145, %157 : vector<1x8x32xf32>
    %cst_51 = arith.constant 9.99999974E-6 : f32
    %159 = vector.broadcast %cst_51 : f32 to vector<1x8x1xf32>
    %160 = arith.addf %156, %159 : vector<1x8x1xf32>
    %161 = math.rsqrt %160 : vector<1x8x1xf32>
    %162 = vector.broadcast %161 : vector<1x8x1xf32> to vector<1x8x32xf32>
    %163 = arith.mulf %158, %162 : vector<1x8x32xf32>
    %164 = vector.shape_cast %11 : vector<1x32xf32> to vector<1x1x32xf32>
    %165 = vector.broadcast %164 : vector<1x1x32xf32> to vector<1x8x32xf32>
    %166 = arith.mulf %163, %165 : vector<1x8x32xf32>
    %167 = vector.shape_cast %12 : vector<1x32xf32> to vector<1x1x32xf32>
    %168 = vector.broadcast %167 : vector<1x1x32xf32> to vector<1x8x32xf32>
    %169 = arith.addf %166, %168 : vector<1x8x32xf32>
    %cst_52 = arith.constant dense<0.000000e+00> : vector<1x1x32xf32>
    %170 = tpu.matmul %3, %169, %cst_52 {dimension_numbers = #tpu.dot_dimension_numbers<[2], [1], [1], [2], [0, 0, 0, 1, 1, 2], [0], [0]>} : vector<1x1x8xf32>, vector<1x8x32xf32>, vector<1x1x32xf32> -> vector<1x1x32xf32>
    %cst_53 = arith.constant dense<0.000000e+00> : vector<1x1xf32>
    %171 = vector.multi_reduction <add>, %3, %cst_53 [2] : vector<1x1x8xf32> to vector<1x1xf32>
    %172 = vector.shape_cast %171 : vector<1x1xf32> to vector<1x1x1xf32>
    %cst_54 = arith.constant 1.000000e-03 : f32
    %173 = vector.broadcast %cst_54 : f32 to vector<1x1x1xf32>
    %174 = arith.maximumf %172, %173 : vector<1x1x1xf32>
    %175 = vector.broadcast %174 : vector<1x1x1xf32> to vector<1x1x32xf32>
    %176 = arith.divf %170, %175 : vector<1x1x32xf32>
    %cst_55 = arith.constant 0.000000e+00 : f32
    %177 = vector.broadcast %cst_55 : f32 to vector<1x1x1xf32>
    %178 = arith.cmpf oeq, %172, %177 : vector<1x1x1xf32>
    %cst_56 = arith.constant 0.000000e+00 : f32
    %179 = vector.shape_cast %178 : vector<1x1x1xi1> to vector<1x1x1xi1>
    %180 = vector.broadcast %179 : vector<1x1x1xi1> to vector<1x1x32xi1>
    %181 = vector.broadcast %cst_56 : f32 to vector<1x1x32xf32>
    %182 = arith.select %180, %181, %176 : vector<1x1x32xi1>, vector<1x1x32xf32>
    %183 = vector.shape_cast %182 : vector<1x1x32xf32> to vector<1x32xf32>
    %c0_57 = arith.constant 0 : index
    %c0_58 = arith.constant 0 : index
    %184 = vector.load %arg9[%c0_57, %c0_58] : memref<1x32xf32, #tpu.memory_space<vmem>>, vector<1x32xf32>
    %185 = arith.mulf %183, %184 : vector<1x32xf32>
    %cst_59 = arith.constant dense<0.000000e+00> : vector<1xf32>
    %186 = vector.multi_reduction <add>, %185, %cst_59 [1] : vector<1x32xf32> to vector<1xf32>
    %187 = vector.shape_cast %186 : vector<1xf32> to vector<1x1xf32>
    %188 = vector.shape_cast %187 : vector<1x1xf32> to vector<1x1x1xf32>
    %189 = vector.shape_cast %188 : vector<1x1x1xf32> to vector<1x1x1xf32>
    %190 = vector.broadcast %189 : vector<1x1x1xf32> to vector<1x8x128xf32>
    %c0_60 = arith.constant 0 : index
    %c0_61 = arith.constant 0 : index
    %c0_62 = arith.constant 0 : index
    %191 = vector.load %arg10[%c0_60, %c0_61, %c0_62] : memref<1x8x128xf32, #tpu.memory_space<vmem>>, vector<1x8x128xf32>
    tpu.vector_store %arg10[%c0_60, %c0_61, %c0_62], %190 {strides = array<i32>} : memref<1x8x128xf32, #tpu.memory_space<vmem>>, vector<1x8x128xf32>,
    return
  }
  func.func @transform_0(%arg0: i32) -> (i32, i32, i32) {
    %c0_i32 = arith.constant 0 : i32
    %c0_i32_0 = arith.constant 0 : i32
    %c0_i32_1 = arith.constant 0 : i32
    return %arg0, %c0_i32, %c0_i32_0 : i32, i32, i32
  }
  func.func @transform_1(%arg0: i32) -> (i32, i32, i32) {
    %c0_i32 = arith.constant 0 : i32
    %c0_i32_0 = arith.constant 0 : i32
    %c0_i32_1 = arith.constant 0 : i32
    return %arg0, %c0_i32, %c0_i32_0 : i32, i32, i32
  }
  func.func @transform_2(%arg0: i32) -> (i32, i32, i32) {
    %c0_i32 = arith.constant 0 : i32
    %c0_i32_0 = arith.constant 0 : i32
    %c0_i32_1 = arith.constant 0 : i32
    return %arg0, %c0_i32, %c0_i32_0 : i32, i32, i32
  }
  func.func @transform_3(%arg0: i32) -> (i32, i32) {
    %c0_i32 = arith.constant 0 : i32
    %c0_i32_0 = arith.constant 0 : i32
    %c0_i32_1 = arith.constant 0 : i32
    return %c0_i32, %c0_i32_0 : i32, i32
  }
  func.func @transform_4(%arg0: i32) -> (i32, i32) {
    %c0_i32 = arith.constant 0 : i32
    %c0_i32_0 = arith.constant 0 : i32
    %c0_i32_1 = arith.constant 0 : i32
    return %c0_i32, %c0_i32_0 : i32, i32
  }
  func.func @transform_5(%arg0: i32) -> (i32, i32) {
    %c0_i32 = arith.constant 0 : i32
    %c0_i32_0 = arith.constant 0 : i32
    %c0_i32_1 = arith.constant 0 : i32
    return %c0_i32, %c0_i32_0 : i32, i32
  }
  func.func @transform_6(%arg0: i32) -> (i32, i32) {
    %c0_i32 = arith.constant 0 : i32
    %c0_i32_0 = arith.constant 0 : i32
    %c0_i32_1 = arith.constant 0 : i32
    return %c0_i32, %c0_i32_0 : i32, i32
  }
  func.func @transform_7(%arg0: i32) -> (i32, i32) {
    %c0_i32 = arith.constant 0 : i32
    %c0_i32_0 = arith.constant 0 : i32
    %c0_i32_1 = arith.constant 0 : i32
    return %c0_i32, %c0_i32_0 : i32, i32
  }
  func.func @transform_8(%arg0: i32) -> (i32, i32) {
    %c0_i32 = arith.constant 0 : i32
    %c0_i32_0 = arith.constant 0 : i32
    %c0_i32_1 = arith.constant 0 : i32
    return %c0_i32, %c0_i32_0 : i32, i32
  }
  func.func @transform_9(%arg0: i32) -> (i32, i32, i32) {
    %c0_i32 = arith.constant 0 : i32
    %c0_i32_0 = arith.constant 0 : i32
    %c0_i32_1 = arith.constant 0 : i32
    return %arg0, %c0_i32, %c0_i32_0 : i32, i32, i32
  }
}

</mosaic_0001>

<llo_original>
// kernel: reward_model_forward.1
$region0: #{reward_model_forward.1}
  #allocation0 [shape = 'u32[]', space=smem, size = 0x4, offset = 0x4, fixed_abs, tag = 'smem constant byte address 0x4 - core index']
  #allocation1 [shape = 'u32[144,128]{1,0:T(1,128)}', space=vmem, size = 0x12000, scoped, tag = 'internal scratch']
  %s0 = inlined_call_operand.vmem [shape: bf16[2,8,32], index: 0, kind: input, shape index: {}]
  %s1 = inlined_call_operand.vmem [shape: f32[2,8,1], index: 1, kind: input, shape index: {}]
  %s2 = inlined_call_operand.vmem [shape: f32[2,1,8], index: 2, kind: input, shape index: {}]
  %s3 = inlined_call_operand.vmem [shape: f32[8,32], index: 3, kind: input, shape index: {}]
  %s4 = inlined_call_operand.vmem [shape: bf16[32,96], index: 4, kind: input, shape index: {}]
  %s5 = inlined_call_operand.vmem [shape: bf16[32,32], index: 5, kind: input, shape index: {}]
  %s6 = inlined_call_operand.vmem [shape: bf16[32,64], index: 6, kind: input, shape index: {}]
  %s7 = inlined_call_operand.vmem [shape: bf16[64,32], index: 7, kind: input, shape index: {}]
  %s8 = inlined_call_operand.vmem [shape: f32[1,32], index: 8, kind: input, shape index: {}]
  %s9 = inlined_call_operand.vmem [shape: f32[2,8,128], index: 9, kind: output, shape index: {}]
  %s10 = sld [smem:[#allocation0]]
  $region69: #{reward_model_forward.1} parent=0
    _
  %s12 = ssub.s32 1, %s10
  %s13 = scalar_select 0, %s12, %s10
  loop: start=0, step=1, limit=4
  $region2: #{reward_model_forward.1} parent=0 // loop_pre_header
    _
  $region3: #{reward_model_forward.1} parent=0 // loop_header
    %s15 = sphi 0, %s19
    %p16 = scmp.ge.s32.totalorder %s15, 4
    %s25 = sphi 0, %s27
    %s28 = sphi 0, %s25
    %s29 = sphi 0, %s28
    %s45 = sphi 0, %s29
    %s51 = sphi 0, %s53
    %s54 = sphi 0, %s51
    %s55 = sphi 0, %s54
    %s71 = sphi 0, %s55
    %s77 = sphi 0, %s79
    %s80 = sphi 0, %s77
    %s81 = sphi 0, %s80
    %s97 = sphi 0, %s81
    %s101 = sphi 0, %s101
    %s103 = sphi 0, %s101
    %s104 = sphi 0, %s103
    %s118 = sphi 0, %s104
    %s122 = sphi 0, %s122
    %s124 = sphi 0, %s122
    %s125 = sphi 0, %s124
    %s139 = sphi 0, %s125
    %s143 = sphi 0, %s143
    %s145 = sphi 0, %s143
    %s146 = sphi 0, %s145
    %s160 = sphi 0, %s146
    %s164 = sphi 0, %s164
    %s166 = sphi 0, %s164
    %s167 = sphi 0, %s166
    %s181 = sphi 0, %s167
    %s185 = sphi 0, %s185
    %s187 = sphi 0, %s185
    %s188 = sphi 0, %s187
    %s202 = sphi 0, %s188
    %s206 = sphi 0, %s206
    %s208 = sphi 0, %s206
    %s209 = sphi 0, %s208
    %s223 = sphi 0, %s209
    %s229 = sphi 0, %s231
    %s232 = sphi 0, %s229
    %s233 = sphi 0, %s232
    %s249 = sphi 0, %s233
  $region4: #{reward_model_forward.1} parent=0 // loop_header_branch
    %18 = sbr.rel (%p16) target = $region8
  $region5: #{reward_model_forward.1} parent=0 // loop_body
    %s20 = ssub.s32 %s15, 1
    %s21 = ssub.s32 %s15, 2
    %s22 = sadd.s32 %s15, 1
    %s23 = ssub.s32 %s15, %s22
    %p24 = scmp.eq.s32.totalorder %s23, 0
    %s26 = sadd.s32 %s25, 1
    %s27 = scalar_select %p24, %s25, %s26
    %p30 = pneg %p24
    %p31 = scmp.eq.s32.totalorder %s15, 1
    %p32 = por %p30, %p31
    %p33 = scmp.ne.s32.totalorder %s25, %s28
    %p34 = scmp.eq.s32.totalorder %s15, 0
    %p35 = por %p33, %p34
    %p36 = scmp.ne.s32.totalorder %s25, %s28
    %p37 = scmp.eq.s32.totalorder %s20, 1
    %p38 = por %p36, %p37
    %p39 = scmp.ne.s32.totalorder %s28, %s29
    %p40 = scmp.eq.s32.totalorder %s20, 0
    %p41 = por %p39, %p40
    %p42 = scmp.ne.s32.totalorder %s28, %s29
    %p43 = scmp.eq.s32.totalorder %s21, 1
    %p44 = por %p42, %p43
    %p46 = scmp.ne.s32.totalorder %s29, %s45
    %p47 = scmp.eq.s32.totalorder %s21, 0
    %p48 = por %p46, %p47
    %s49 = ssub.s32 %s15, %s22
    %p50 = scmp.eq.s32.totalorder %s49, 0
    %s52 = sadd.s32 %s51, 1
    %s53 = scalar_select %p50, %s51, %s52
    %p56 = pneg %p50
    %p57 = scmp.eq.s32.totalorder %s15, 1
    %p58 = por %p56, %p57
    %p59 = scmp.ne.s32.totalorder %s51, %s54
    %p60 = scmp.eq.s32.totalorder %s15, 0
    %p61 = por %p59, %p60
    %p62 = scmp.ne.s32.totalorder %s51, %s54
    %p63 = scmp.eq.s32.totalorder %s20, 1
    %p64 = por %p62, %p63
    %p65 = scmp.ne.s32.totalorder %s54, %s55
    %p66 = scmp.eq.s32.totalorder %s20, 0
    %p67 = por %p65, %p66
    %p68 = scmp.ne.s32.totalorder %s54, %s55
    %p69 = scmp.eq.s32.totalorder %s21, 1
    %p70 = por %p68, %p69
    %p72 = scmp.ne.s32.totalorder %s55, %s71
    %p73 = scmp.eq.s32.totalorder %s21, 0
    %p74 = por %p72, %p73
    %s75 = ssub.s32 %s15, %s22
    %p76 = scmp.eq.s32.totalorder %s75, 0
    %s78 = sadd.s32 %s77, 1
    %s79 = scalar_select %p76, %s77, %s78
    %p82 = pneg %p76
    %p83 = scmp.eq.s32.totalorder %s15, 1
    %p84 = por %p82, %p83
    %p85 = scmp.ne.s32.totalorder %s77, %s80
    %p86 = scmp.eq.s32.totalorder %s15, 0
    %p87 = por %p85, %p86
    %p88 = scmp.ne.s32.totalorder %s77, %s80
    %p89 = scmp.eq.s32.totalorder %s20, 1
    %p90 = por %p88, %p89
    %p91 = scmp.ne.s32.totalorder %s80, %s81
    %p92 = scmp.eq.s32.totalorder %s20, 0
    %p93 = por %p91, %p92
    %p94 = scmp.ne.s32.totalorder %s80, %s81
    %p95 = scmp.eq.s32.totalorder %s21, 1
    %p96 = por %p94, %p95
    %p98 = scmp.ne.s32.totalorder %s81, %s97
    %p99 = scmp.eq.s32.totalorder %s21, 0
    %p100 = por %p98, %p99
    %s102 = sadd.s32 %s101, 1
    %p105 = scmp.eq.s32.totalorder %s15, 1
    %p106 = scmp.ne.s32.totalorder %s101, %s103
    %p107 = scmp.eq.s32.totalorder %s15, 0
    %p108 = por %p106, %p107
    %p109 = scmp.ne.s32.totalorder %s101, %s103
    %p110 = scmp.eq.s32.totalorder %s20, 1
    %p111 = por %p109, %p110
    %p112 = scmp.ne.s32.totalorder %s103, %s104
    %p113 = scmp.eq.s32.totalorder %s20, 0
    %p114 = por %p112, %p113
    %p115 = scmp.ne.s32.totalorder %s103, %s104
    %p116 = scmp.eq.s32.totalorder %s21, 1
    %p117 = por %p115, %p116
    %p119 = scmp.ne.s32.totalorder %s104, %s118
    %p120 = scmp.eq.s32.totalorder %s21, 0
    %p121 = por %p119, %p120
    %s123 = sadd.s32 %s122, 1
    %p126 = scmp.eq.s32.totalorder %s15, 1
    %p127 = scmp.ne.s32.totalorder %s122, %s124
    %p128 = scmp.eq.s32.totalorder %s15, 0
    %p129 = por %p127, %p128
    %p130 = scmp.ne.s32.totalorder %s122, %s124
    %p131 = scmp.eq.s32.totalorder %s20, 1
    %p132 = por %p130, %p131
    %p133 = scmp.ne.s32.totalorder %s124, %s125
    %p134 = scmp.eq.s32.totalorder %s20, 0
    %p135 = por %p133, %p134
    %p136 = scmp.ne.s32.totalorder %s124, %s125
    %p137 = scmp.eq.s32.totalorder %s21, 1
    %p138 = por %p136, %p137
    %p140 = scmp.ne.s32.totalorder %s125, %s139
    %p141 = scmp.eq.s32.totalorder %s21, 0
    %p142 = por %p140, %p141
    %s144 = sadd.s32 %s143, 1
    %p147 = scmp.eq.s32.totalorder %s15, 1
    %p148 = scmp.ne.s32.totalorder %s143, %s145
    %p149 = scmp.eq.s32.totalorder %s15, 0
    %p150 = por %p148, %p149
    %p151 = scmp.ne.s32.totalorder %s143, %s145
    %p152 = scmp.eq.s32.totalorder %s20, 1
    %p153 = por %p151, %p152
    %p154 = scmp.ne.s32.totalorder %s145, %s146
    %p155 = scmp.eq.s32.totalorder %s20, 0
    %p156 = por %p154, %p155
    %p157 = scmp.ne.s32.totalorder %s145, %s146
    %p158 = scmp.eq.s32.totalorder %s21, 1
    %p159 = por %p157, %p158
    %p161 = scmp.ne.s32.totalorder %s146, %s160
    %p162 = scmp.eq.s32.totalorder %s21, 0
    %p163 = por %p161, %p162
    %s165 = sadd.s32 %s164, 1
    %p168 = scmp.eq.s32.totalorder %s15, 1
    %p169 = scmp.ne.s32.totalorder %s164, %s166
    %p170 = scmp.eq.s32.totalorder %s15, 0
    %p171 = por %p169, %p170
    %p172 = scmp.ne.s32.totalorder %s164, %s166
    %p173 = scmp.eq.s32.totalorder %s20, 1
    %p174 = por %p172, %p173
    %p175 = scmp.ne.s32.totalorder %s166, %s167
    %p176 = scmp.eq.s32.totalorder %s20, 0
    %p177 = por %p175, %p176
    %p178 = scmp.ne.s32.totalorder %s166, %s167
    %p179 = scmp.eq.s32.totalorder %s21, 1
    %p180 = por %p178, %p179
    %p182 = scmp.ne.s32.totalorder %s167, %s181
    %p183 = scmp.eq.s32.totalorder %s21, 0
    %p184 = por %p182, %p183
    %s186 = sadd.s32 %s185, 1
    %p189 = scmp.eq.s32.totalorder %s15, 1
    %p190 = scmp.ne.s32.totalorder %s185, %s187
    %p191 = scmp.eq.s32.totalorder %s15, 0
    %p192 = por %p190, %p191
    %p193 = scmp.ne.s32.totalorder %s185, %s187
    %p194 = scmp.eq.s32.totalorder %s20, 1
    %p195 = por %p193, %p194
    %p196 = scmp.ne.s32.totalorder %s187, %s188
    %p197 = scmp.eq.s32.totalorder %s20, 0
    %p198 = por %p196, %p197
    %p199 = scmp.ne.s32.totalorder %s187, %s188
    %p200 = scmp.eq.s32.totalorder %s21, 1
    %p201 = por %p199, %p200
    %p203 = scmp.ne.s32.totalorder %s188, %s202
    %p204 = scmp.eq.s32.totalorder %s21, 0
    %p205 = por %p203, %p204
    %s207 = sadd.s32 %s206, 1
    %p210 = scmp.eq.s32.totalorder %s15, 1
    %p211 = scmp.ne.s32.totalorder %s206, %s208
    %p212 = scmp.eq.s32.totalorder %s15, 0
    %p213 = por %p211, %p212
    %p214 = scmp.ne.s32.totalorder %s206, %s208
    %p215 = scmp.eq.s32.totalorder %s20, 1
    %p216 = por %p214, %p215
    %p217 = scmp.ne.s32.totalorder %s208, %s209
    %p218 = scmp.eq.s32.totalorder %s20, 0
    %p219 = por %p217, %p218
    %p220 = scmp.ne.s32.totalorder %s208, %s209
    %p221 = scmp.eq.s32.totalorder %s21, 1
    %p222 = por %p220, %p221
    %p224 = scmp.ne.s32.totalorder %s209, %s223
    %p225 = scmp.eq.s32.totalorder %s21, 0
    %p226 = por %p224, %p225
    %s227 = ssub.s32 %s15, %s22
    %p228 = scmp.eq.s32.totalorder %s227, 0
    %s230 = sadd.s32 %s229, 1
    %s231 = scalar_select %p228, %s229, %s230
    %p234 = pneg %p228
    %p235 = scmp.eq.s32.totalorder %s15, 1
    %p236 = por %p234, %p235
    %p237 = scmp.ne.s32.totalorder %s229, %s232
    %p238 = scmp.eq.s32.totalorder %s15, 0
    %p239 = por %p237, %p238
    %p240 = scmp.ne.s32.totalorder %s229, %s232
    %p241 = scmp.eq.s32.totalorder %s20, 1
    %p242 = por %p240, %p241
    %p243 = scmp.ne.s32.totalorder %s232, %s233
    %p244 = scmp.eq.s32.totalorder %s20, 0
    %p245 = por %p243, %p244
    %p246 = scmp.ne.s32.totalorder %s232, %s233
    %p247 = scmp.eq.s32.totalorder %s21, 1
    %p248 = por %p246, %p247
    %p250 = scmp.ne.s32.totalorder %s233, %s249
    %p251 = scmp.eq.s32.totalorder %s21, 0
    %p252 = por %p250, %p251
    %p253 = scmp.le.s32.totalorder 1, %s15
    %p254 = scmp.lt.s32.totalorder %s15, 3
    %p255 = pnand %p253, %p254
    %p256 = pneg %p255
    // Predicated region
    $region9: #{reward_model_forward.1} parent=5 // pred_check
      _
    $region10: #{reward_model_forward.1} parent=5 // pred_check_branch
      %258 = sbr.rel (%p255) target = $region12
    $region11: #{reward_model_forward.1} parent=5 // pred_region
      %s259 = ssub.s32 %s15, 1
      // Predicated region
      $region13: #{reward_model_forward.1} parent=11 // pred_check
        %p260 = pneg %p114
      $region14: #{reward_model_forward.1} parent=11 // pred_check_branch
        %262 = sbr.rel (%p260) target = $region16
      $region15: #{reward_model_forward.1} parent=11 // pred_region
        _
      $region16: #{reward_model_forward.1} parent=11 // pred_fallthru
        _
      // Predicated region
      $region17: #{reward_model_forward.1} parent=11 // pred_check
        %p263 = pneg %p135
      $region18: #{reward_model_forward.1} parent=11 // pred_check_branch
        %265 = sbr.rel (%p263) target = $region20
      $region19: #{reward_model_forward.1} parent=11 // pred_region
        _
      $region20: #{reward_model_forward.1} parent=11 // pred_fallthru
        _
      // Predicated region
      $region21: #{reward_model_forward.1} parent=11 // pred_check
        %p266 = pneg %p156
      $region22: #{reward_model_forward.1} parent=11 // pred_check_branch
        %268 = sbr.rel (%p266) target = $region24
      $region23: #{reward_model_forward.1} parent=11 // pred_region
        _
      $region24: #{reward_model_forward.1} parent=11 // pred_fallthru
        _
      // Predicated region
      $region25: #{reward_model_forward.1} parent=11 // pred_check
        %p269 = pneg %p177
      $region26: #{reward_model_forward.1} parent=11 // pred_check_branch
        %271 = sbr.rel (%p269) target = $region28
      $region27: #{reward_model_forward.1} parent=11 // pred_region
        _
      $region28: #{reward_model_forward.1} parent=11 // pred_fallthru
        _
      // Predicated region
      $region29: #{reward_model_forward.1} parent=11 // pred_check
        %p272 = pneg %p198
      $region30: #{reward_model_forward.1} parent=11 // pred_check_branch
        %274 = sbr.rel (%p272) target = $region32
      $region31: #{reward_model_forward.1} parent=11 // pred_region
        _
      $region32: #{reward_model_forward.1} parent=11 // pred_fallthru
        _
      // Predicated region
      $region33: #{reward_model_forward.1} parent=11 // pred_check
        %p275 = pneg %p219
      $region34: #{reward_model_forward.1} parent=11 // pred_check_branch
        %277 = sbr.rel (%p275) target = $region36
      $region35: #{reward_model_forward.1} parent=11 // pred_region
        _
      $region36: #{reward_model_forward.1} parent=11 // pred_fallthru
        _
    $region12: #{reward_model_forward.1} parent=5 // pred_fallthru
      _
    %p278 = scmp.lt.s32.totalorder %s15, 2
    // Predicated region
    $region37: #{reward_model_forward.1} parent=5 // pred_check
      %p279 = pneg %p278
    $region38: #{reward_model_forward.1} parent=5 // pred_check_branch
      %281 = sbr.rel (%p279) target = $region40
    $region39: #{reward_model_forward.1} parent=5 // pred_region
      // Predicated region
      $region41: #{reward_model_forward.1} parent=39 // pred_check
        %p282 = pneg %p35
      $region42: #{reward_model_forward.1} parent=39 // pred_check_branch
        %284 = sbr.rel (%p282) target = $region44
      $region43: #{reward_model_forward.1} parent=39 // pred_region
        %p285 = scmp.lt.s32.totalorder %s15, 1
        %s286 = scalar_select %p285, %s15, 1
        %s287 = smul.addr %s286, 4
        %s288 = scalar_lea.vmem %s0, %s287
      $region44: #{reward_model_forward.1} parent=39 // pred_fallthru
        _
      // Predicated region
      $region45: #{reward_model_forward.1} parent=39 // pred_check
        %p289 = pneg %p61
      $region46: #{reward_model_forward.1} parent=39 // pred_check_branch
        %291 = sbr.rel (%p289) target = $region48
      $region47: #{reward_model_forward.1} parent=39 // pred_region
        %p292 = scmp.lt.s32.totalorder %s15, 1
        %s293 = scalar_select %p292, %s15, 1
        %s294 = smul.addr %s293, 8
        %s295 = scalar_lea.vmem %s1, %s294
      $region48: #{reward_model_forward.1} parent=39 // pred_fallthru
        _
      // Predicated region
      $region49: #{reward_model_forward.1} parent=39 // pred_check
        %p296 = pneg %p87
      $region50: #{reward_model_forward.1} parent=39 // pred_check_branch
        %298 = sbr.rel (%p296) target = $region52
      $region51: #{reward_model_forward.1} parent=39 // pred_region
        %p299 = scmp.lt.s32.totalorder %s15, 1
        %s300 = scalar_select %p299, %s15, 1
        %s301 = scalar_lea.vmem %s2, %s300
      $region52: #{reward_model_forward.1} parent=39 // pred_fallthru
        _
    $region40: #{reward_model_forward.1} parent=5 // pred_fallthru
      _
    %p302 = scmp.le.s32.totalorder 1, %s15
    %p303 = scmp.lt.s32.totalorder %s15, 3
    %p304 = pnand %p302, %p303
    %p305 = pneg %p304
    // Predicated region
    $region53: #{reward_model_forward.1} parent=5 // pred_check
      _
    $region54: #{reward_model_forward.1} parent=5 // pred_check_branch
      %307 = sbr.rel (%p304) target = $region56
    $region55: #{reward_model_forward.1} parent=5 // pred_region
      %s308 = ssub.s32 %s15, 1
      %p309 = scmp.lt.s32.totalorder %s20, 1
      %s310 = scalar_select %p309, %s20, 1
      %s311 = smul.addr %s310, 4
      %s312 = scalar_lea.vmem %s0, %s311
      %p313 = pneg %p41
      %p314 = pneg %p38
      %p315 = scmp.lt.s32.totalorder %s20, 1
      %s316 = scalar_select %p315, %s20, 1
      %s317 = smul.addr %s316, 8
      %s318 = scalar_lea.vmem %s1, %s317
      %p319 = pneg %p67
      %p320 = pneg %p64
      %p321 = scmp.lt.s32.totalorder %s20, 1
      %s322 = scalar_select %p321, %s20, 1
      %s323 = scalar_lea.vmem %s2, %s322
      %p324 = pneg %p93
      %p325 = pneg %p90
      %p326 = pneg %p114
      %p327 = pneg %p111
      %p328 = pneg %p135
      %p329 = pneg %p132
      %p330 = pneg %p156
      %p331 = pneg %p153
      %p332 = pneg %p177
      %p333 = pneg %p174
      %p334 = pneg %p198
      %p335 = pneg %p195
      %p336 = pneg %p219
      %p337 = pneg %p216
      %p338 = pneg %p245
      %p339 = pneg %p242
      %p340 = scmp.lt.s32.totalorder %s20, 1
      %s341 = scalar_select %p340, %s20, 1
      %s342 = smul.addr %s341, 8
      %s343 = scalar_lea.vmem %s9, %s342
      %p344 = scmp.lt.s32.totalorder %s20, 1
      %s345 = scalar_select %p344, %s20, 1
      %s346 = smul.addr %s345, 4
      %s347 = scalar_lea.vmem %s0, %s346
      %p348 = scmp.lt.s32.totalorder %s20, 1
      %s349 = scalar_select %p348, %s20, 1
      %s350 = smul.addr %s349, 8
      %s351 = scalar_lea.vmem %s1, %s350
      %p352 = scmp.lt.s32.totalorder %s20, 1
      %s353 = scalar_select %p352, %s20, 1
      %s354 = scalar_lea.vmem %s2, %s353
      %p355 = scmp.lt.s32.totalorder %s20, 1
      %s356 = scalar_select %p355, %s20, 1
      %s357 = smul.addr %s356, 8
      %s358 = scalar_lea.vmem %s9, %s357
      %v360 = vld [vmem:[%s347] sm:$0xf]
      %v361 = vunpack.c.l.bf16 %v360
      %v362 = vld [vmem:[%s351] sm:$0xff]
      %v363 = vld [vmem:[%s354] sm:$0x1]
      %v364 = vld [vmem:[%s3] sm:$0xff]
      %vm365 = vcmp.gt.f32.partialorder %v362, 0.5
      %v366 = vsel %vm365, 1, 0
      %367 = vset.pattern.permute.xlu0 0
      %368 = vperm.xlu0 %367, %v366
      %v369 = vpop.permute.xlu0 %368
      %vm370 = vcmp.eq.s32.totalorder %v369, 1
      %v371 = vlaneseq
      %v372 = vshrl.u32 %v371, 7
      %v373 = vsub.s32 0, %v372
      %v374 = vrot.slane %v364, %v373
      %v375 = vlaneseq
      %v376 = vshrl.u32 %v375, 7
      %v377 = vsub.s32 1, %v376
      %v378 = vrot.slane %v364, %v377
      %v379 = vsel %vm370, %v374, %v378
      %v380 = vadd.f32 %v361, %v379
      %vm381 = vcmask 261120
      %v382 = vsel %vm381, %v380, 0.0
      %383 = vadd.xlane.f32.xlu0 %v382
      %v384 = vpop.xlane.xlu0 %383
      %v385 = vrcp.pop 32.0
      %v386 = vmul.f32 %v384, %v385
      %v387 = vsub.f32 %v380, %v386
      %v388 = vmul.f32 %v387, %v387
      %v389 = vsel %vm381, %v388, 0.0
      %390 = vadd.xlane.f32.xlu0 %v389
      %v391 = vpop.xlane.xlu0 %390
      %v392 = vmul.f32 %v391, %v385
      %v393 = vadd.f32 %v392, 1e-05
      %v394 = vrsqrt.pop %v393
      %v395 = vmul.f32 %v387, %v394
      %v396 = vlaneseq
      %v397 = vshrl.u32 %v396, 7
      %v398 = vsub.s32 2, %v397
      %v399 = vrot.slane %v364, %v398
      %v400 = vmul.f32 %v395, %v399
      %v401 = vlaneseq
      %v402 = vshrl.u32 %v401, 7
      %v403 = vsub.s32 3, %v402
      %v404 = vrot.slane %v364, %v403
      %v405 = vadd.f32 %v400, %v404
      %v406 = vpack.c.bf16 %v405, %v405
      %v407 = vld [vmem:[%s4] sm:$0xf]
      %v408 = vld [vmem:[%s4 + $0x4] sm:$0xf]
      %v409 = vld [vmem:[%s4 + $0x8] sm:$0xf]
      %v410 = vld [vmem:[%s4 + $0xc] sm:$0xf]
      %v415 = vunpack.c.l.b16 %v407
      %v416 = vunpack.c.l.b16 %v408
      %v417 = vunpack.c.l.b16 %v409
      %v418 = vunpack.c.l.b16 %v410
      %v419 = vpack.c.b16 %v416, %v415
      %v420 = vpack.c.b16 %v418, %v417
      %v424 = vsel %vm381, %v406, 0
      %426 = vmatprep.subr.bf16.mxu0 0
      %427 = vmatpush1.bf16.msra.mxu0 0
      %428 = vmatprep.subr.bf16.mxu0 0
      %429 = vmatpush1.bf16.msra.mxu0 0
      %430 = vmatprep.subr.bf16.mxu0 0
      %431 = vmatpush1.bf16.msra.mxu0 0
      %432 = vmatprep.subr.bf16.mxu0 0
      %433 = vmatpush1.bf16.msra.mxu0 0
      %434 = vmatprep.subr.bf16.mxu0 0
      %435 = vmatpush1.bf16.msra.mxu0 0
      %436 = vmatprep.subr.bf16.mxu0 0
      %437 = vmatpush1.bf16.msra.mxu0 0
      %438 = vmatprep.subr.bf16.mxu0 0
      %439 = vmatpush1.bf16.msra.mxu0 %v420
      %440 = vmatprep.subr.bf16.mxu0 0
      %441 = vmatpush1.bf16.msra.mxu0 %v419
      %442 = vmatprep.subr.bf16.mxu0 0
      %443 = vmatpush2.bf16.msra.mxu0 0
      %444 = vmatprep.subr.bf16.mxu0 0
      %445 = vmatpush2.bf16.msra.mxu0 0
      %446 = vmatprep.subr.bf16.mxu0 0
      %447 = vmatpush2.bf16.msra.mxu0 0
      %448 = vmatprep.subr.bf16.mxu0 0
      %449 = vmatpush2.bf16.msra.mxu0 0
      %450 = vmatprep.subr.bf16.mxu0 0
      %451 = vmatpush2.bf16.msra.mxu0 0
      %452 = vmatprep.subr.bf16.mxu0 0
      %453 = vmatpush2.bf16.msra.mxu0 0
      %454 = vmatprep.subr.bf16.mxu0 0
      %455 = vmatpush2.bf16.msra.mxu0 0
      %456 = vmatprep.subr.bf16.mxu0 0
      %457 = vmatpush2.bf16.msra.mxu0 0
      %458 = vmatprep.mubr.bf16.mxu0 0
      %459 = vmatmul.mubr.bf16.gmra.mxu0 %v424
      %v460 = vpop.f32.mrf.mxu0
      %v461 = vadd.f32 0.0, %v460
      %v462 = vpop.f32.mrf.mxu0
      %v463 = vpop.f32.mrf.mxu0
      %v464 = vpop.f32.mrf.mxu0
      %465 = vdwg.mxu0
      %v466 = vmul.f32 %v461, 0.17677669
      %v467 = vpack.c.bf16 %v466, %v466
      %v468 = vpack.c.bf16 %v461, %v461
      %470 = vrot.lane.b32.xlu0 %v468, 96
      %v471 = vpop.permute.xlu0 %470
      %v473 = vsel %vm381, %v467, 0
      %v476 = vsel %vm381, %v471, 0
      %478 = vmatprep.subr.bf16.mxu0 0
      %479 = vmatpush1.bf16.xpose.msra.mxu0 0
      %480 = vmatprep.subr.bf16.mxu0 0
      %481 = vmatpush1.bf16.xpose.msra.mxu0 0
      %482 = vmatprep.subr.bf16.mxu0 0
      %483 = vmatpush1.bf16.xpose.msra.mxu0 0
      %484 = vmatprep.subr.bf16.mxu0 0
      %485 = vmatpush1.bf16.xpose.msra.mxu0 0
      %486 = vmatprep.subr.bf16.mxu0 0
      %487 = vmatpush1.bf16.xpose.msra.mxu0 0
      %488 = vmatprep.subr.bf16.mxu0 0
      %489 = vmatpush1.bf16.xpose.msra.mxu0 0
      %490 = vmatprep.subr.bf16.mxu0 0
      %491 = vmatpush1.bf16.xpose.msra.mxu0 0
      %492 = vmatprep.subr.bf16.mxu0 0
      %493 = vmatpush1.bf16.xpose.msra.mxu0 %v476
      %494 = vmatprep.subr.bf16.mxu0 0
      %495 = vmatpush2.bf16.xpose.msra.mxu0 0
      %496 = vmatprep.subr.bf16.mxu0 0
      %497 = vmatpush2.bf16.xpose.msra.mxu0 0
      %498 = vmatprep.subr.bf16.mxu0 0
      %499 = vmatpush2.bf16.xpose.msra.mxu0 0
      %500 = vmatprep.subr.bf16.mxu0 0
      %501 = vmatpush2.bf16.xpose.msra.mxu0 0
      %502 = vmatprep.subr.bf16.mxu0 0
      %503 = vmatpush2.bf16.xpose.msra.mxu0 0
      %504 = vmatprep.subr.bf16.mxu0 0
      %505 = vmatpush2.bf16.xpose.msra.mxu0 0
      %506 = vmatprep.subr.bf16.mxu0 0
      %507 = vmatpush2.bf16.xpose.msra.mxu0 0
      %508 = vmatprep.subr.bf16.mxu0 0
      %509 = vmatpush2.bf16.xpose.msra.mxu0 0
      %510 = vmatprep.mubr.bf16.mxu0 0
      %511 = vmatmul.mubr.bf16.gmra.mxu0 %v473
      %v512 = vpop.f32.mrf.mxu0
      %v513 = vadd.f32 0.0, %v512
      %v514 = vpop.f32.mrf.mxu0
      %v515 = vpop.f32.mrf.mxu0
      %v516 = vpop.f32.mrf.mxu0
      %517 = vdwg.mxu0
      %vm518 = vcmp.gt.f32.partialorder %v363, 0.5
      %v519 = vsel %vm518, 1, 0
      %v520 = vlaneseq
      %v521 = vshrl.u32 %v520, 7
      %v522 = vsub.s32 0, %v521
      %v523 = vrot.slane %v519, %v522
      %vm524 = vcmp.eq.s32.totalorder %v523, 1
      %v525 = vsel %vm524, %v513, -1e+30
      %vm526 = vcmask 64512
      %v527 = vsel %vm526, %v525, -inf
      %528 = vmax.xlane.f32.xlu0 %v527
      %v529 = vpop.xlane.xlu0 %528
      %v530 = vmax.f32 %v529, -1e+30
      %v531 = vsub.f32 -1e+30, %v530
      %v532 = vmul.f32 %v531, 1.442695
      %v533 = vpow.pop %v532
      %v534 = vsub.f32 %v525, %v530
      %v535 = vmul.f32 %v534, 1.442695
      %v536 = vpow.pop %v535
      %v537 = vmul.f32 %v533, 0.0
      %v538 = vsel %vm526, %v536, 0.0
      %539 = vadd.xlane.f32.xlu0 %v538
      %v540 = vpop.xlane.xlu0 %539
      %v541 = vadd.f32 %v537, %v540
      %v542 = vpack.c.bf16 %v536, %v536
      %543 = vrot.lane.b32.xlu0 %v468, 64
      %v544 = vpop.permute.xlu0 %543
      %v546 = vsel %vm526, %v542, 0
      %vm548 = vcmask 1043456
      %v550 = vsel %vm548, %v544, 0
      %552 = vmatprep.subr.bf16.mxu0 0
      %553 = vmatpush1.bf16.msra.mxu0 0
      %554 = vmatprep.subr.bf16.mxu0 0
      %555 = vmatpush1.bf16.msra.mxu0 0
      %556 = vmatprep.subr.bf16.mxu0 0
      %557 = vmatpush1.bf16.msra.mxu0 0
      %558 = vmatprep.subr.bf16.mxu0 0
      %559 = vmatpush1.bf16.msra.mxu0 0
      %560 = vmatprep.subr.bf16.mxu0 0
      %561 = vmatpush1.bf16.msra.mxu0 0
      %562 = vmatprep.subr.bf16.mxu0 0
      %563 = vmatpush1.bf16.msra.mxu0 0
      %564 = vmatprep.subr.bf16.mxu0 0
      %565 = vmatpush1.bf16.msra.mxu0 0
      %566 = vmatprep.subr.bf16.mxu0 0
      %567 = vmatpush1.bf16.msra.mxu0 %v550
      %568 = vmatprep.subr.bf16.mxu0 0
      %569 = vmatpush2.bf16.msra.mxu0 0
      %570 = vmatprep.subr.bf16.mxu0 0
      %571 = vmatpush2.bf16.msra.mxu0 0
      %572 = vmatprep.subr.bf16.mxu0 0
      %573 = vmatpush2.bf16.msra.mxu0 0
      %574 = vmatprep.subr.bf16.mxu0 0
      %575 = vmatpush2.bf16.msra.mxu0 0
      %576 = vmatprep.subr.bf16.mxu0 0
      %577 = vmatpush2.bf16.msra.mxu0 0
      %578 = vmatprep.subr.bf16.mxu0 0
      %579 = vmatpush2.bf16.msra.mxu0 0
      %580 = vmatprep.subr.bf16.mxu0 0
      %581 = vmatpush2.bf16.msra.mxu0 0
      %582 = vmatprep.subr.bf16.mxu0 0
      %583 = vmatpush2.bf16.msra.mxu0 0
      %584 = vmatprep.mubr.bf16.mxu0 0
      %585 = vmatmul.mubr.bf16.gmra.mxu0 %v546
      %v586 = vpop.f32.mrf.mxu0
      %v587 = vadd.f32 0.0, %v586
      %v588 = vpop.f32.mrf.mxu0
      %v589 = vpop.f32.mrf.mxu0
      %v590 = vpop.f32.mrf.mxu0
      %591 = vdwg.mxu0
      %v592 = vadd.f32 %v537, %v587
      %v593 = vrcp.pop %v541
      %v594 = vmul.f32 %v592, %v593
      %v595 = vpack.c.bf16 %v594, %v594
      %v596 = vld [vmem:[%s5] sm:$0xf]
      %v597 = vld [vmem:[%s5 + $0x4] sm:$0xf]
      %v598 = vld [vmem:[%s5 + $0x8] sm:$0xf]
      %v599 = vld [vmem:[%s5 + $0xc] sm:$0xf]
      %v604 = vunpack.c.l.b16 %v596
      %v605 = vunpack.c.l.b16 %v597
      %v606 = vunpack.c.l.b16 %v598
      %v607 = vunpack.c.l.b16 %v599
      %v608 = vpack.c.b16 %v605, %v604
      %v609 = vpack.c.b16 %v607, %v606
      %v613 = vsel %vm381, %v595, 0
      %615 = vmatprep.subr.bf16.mxu0 0
      %616 = vmatpush1.bf16.msra.mxu0 0
      %617 = vmatprep.subr.bf16.mxu0 0
      %618 = vmatpush1.bf16.msra.mxu0 0
      %619 = vmatprep.subr.bf16.mxu0 0
      %620 = vmatpush1.bf16.msra.mxu0 0
      %621 = vmatprep.subr.bf16.mxu0 0
      %622 = vmatpush1.bf16.msra.mxu0 0
      %623 = vmatprep.subr.bf16.mxu0 0
      %624 = vmatpush1.bf16.msra.mxu0 0
      %625 = vmatprep.subr.bf16.mxu0 0
      %626 = vmatpush1.bf16.msra.mxu0 0
      %627 = vmatprep.subr.bf16.mxu0 0
      %628 = vmatpush1.bf16.msra.mxu0 %v609
      %629 = vmatprep.subr.bf16.mxu0 0
      %630 = vmatpush1.bf16.msra.mxu0 %v608
      %631 = vmatprep.subr.bf16.mxu0 0
      %632 = vmatpush2.bf16.msra.mxu0 0
      %633 = vmatprep.subr.bf16.mxu0 0
      %634 = vmatpush2.bf16.msra.mxu0 0
      %635 = vmatprep.subr.bf16.mxu0 0
      %636 = vmatpush2.bf16.msra.mxu0 0
      %637 = vmatprep.subr.bf16.mxu0 0
      %638 = vmatpush2.bf16.msra.mxu0 0
      %639 = vmatprep.subr.bf16.mxu0 0
      %640 = vmatpush2.bf16.msra.mxu0 0
      %641 = vmatprep.subr.bf16.mxu0 0
      %642 = vmatpush2.bf16.msra.mxu0 0
      %643 = vmatprep.subr.bf16.mxu0 0
      %644 = vmatpush2.bf16.msra.mxu0 0
      %645 = vmatprep.subr.bf16.mxu0 0
      %646 = vmatpush2.bf16.msra.mxu0 0
      %647 = vmatprep.mubr.bf16.mxu0 0
      %648 = vmatmul.mubr.bf16.gmra.mxu0 %v613
      %v649 = vpop.f32.mrf.mxu0
      %v650 = vadd.f32 0.0, %v649
      %v651 = vpop.f32.mrf.mxu0
      %v652 = vpop.f32.mrf.mxu0
      %v653 = vpop.f32.mrf.mxu0
      %654 = vdwg.mxu0
      %v655 = vadd.f32 %v380, %v650
      %v656 = vsel %vm381, %v655, 0.0
      %657 = vadd.xlane.f32.xlu0 %v656
      %v658 = vpop.xlane.xlu0 %657
      %v659 = vmul.f32 %v658, %v385
      %v660 = vsub.f32 %v655, %v659
      %v661 = vmul.f32 %v660, %v660
      %v662 = vsel %vm381, %v661, 0.0
      %663 = vadd.xlane.f32.xlu0 %v662
      %v664 = vpop.xlane.xlu0 %663
      %v665 = vmul.f32 %v664, %v385
      %v666 = vadd.f32 %v665, 1e-05
      %v667 = vrsqrt.pop %v666
      %v668 = vmul.f32 %v660, %v667
      %v669 = vlaneseq
      %v670 = vshrl.u32 %v669, 7
      %v671 = vsub.s32 4, %v670
      %v672 = vrot.slane %v364, %v671
      %v673 = vmul.f32 %v668, %v672
      %v674 = vlaneseq
      %v675 = vshrl.u32 %v674, 7
      %v676 = vsub.s32 5, %v675
      %v677 = vrot.slane %v364, %v676
      %v678 = vadd.f32 %v673, %v677
      %v679 = vpack.c.bf16 %v678, %v678
      %v680 = vld [vmem:[%s6] sm:$0xf]
      %v681 = vld [vmem:[%s6 + $0x4] sm:$0xf]
      %v682 = vld [vmem:[%s6 + $0x8] sm:$0xf]
      %v683 = vld [vmem:[%s6 + $0xc] sm:$0xf]
      %v688 = vunpack.c.l.b16 %v680
      %v689 = vunpack.c.l.b16 %v681
      %v690 = vunpack.c.l.b16 %v682
      %v691 = vunpack.c.l.b16 %v683
      %v692 = vpack.c.b16 %v689, %v688
      %v693 = vpack.c.b16 %v691, %v690
      %v697 = vsel %vm381, %v679, 0
      %699 = vmatprep.subr.bf16.mxu0 0
      %700 = vmatpush1.bf16.msra.mxu0 0
      %701 = vmatprep.subr.bf16.mxu0 0
      %702 = vmatpush1.bf16.msra.mxu0 0
      %703 = vmatprep.subr.bf16.mxu0 0
      %704 = vmatpush1.bf16.msra.mxu0 0
      %705 = vmatprep.subr.bf16.mxu0 0
      %706 = vmatpush1.bf16.msra.mxu0 0
      %707 = vmatprep.subr.bf16.mxu0 0
      %708 = vmatpush1.bf16.msra.mxu0 0
      %709 = vmatprep.subr.bf16.mxu0 0
      %710 = vmatpush1.bf16.msra.mxu0 0
      %711 = vmatprep.subr.bf16.mxu0 0
      %712 = vmatpush1.bf16.msra.mxu0 %v693
      %713 = vmatprep.subr.bf16.mxu0 0
      %714 = vmatpush1.bf16.msra.mxu0 %v692
      %715 = vmatprep.subr.bf16.mxu0 0
      %716 = vmatpush2.bf16.msra.mxu0 0
      %717 = vmatprep.subr.bf16.mxu0 0
      %718 = vmatpush2.bf16.msra.mxu0 0
      %719 = vmatprep.subr.bf16.mxu0 0
      %720 = vmatpush2.bf16.msra.mxu0 0
      %721 = vmatprep.subr.bf16.mxu0 0
      %722 = vmatpush2.bf16.msra.mxu0 0
      %723 = vmatprep.subr.bf16.mxu0 0
      %724 = vmatpush2.bf16.msra.mxu0 0
      %725 = vmatprep.subr.bf16.mxu0 0
      %726 = vmatpush2.bf16.msra.mxu0 0
      %727 = vmatprep.subr.bf16.mxu0 0
      %728 = vmatpush2.bf16.msra.mxu0 0
      %729 = vmatprep.subr.bf16.mxu0 0
      %730 = vmatpush2.bf16.msra.mxu0 0
      %731 = vmatprep.mubr.bf16.mxu0 0
      %732 = vmatmul.mubr.bf16.gmra.mxu0 %v697
      %v733 = vpop.f32.mrf.mxu0
      %v734 = vadd.f32 0.0, %v733
      %v735 = vpop.f32.mrf.mxu0
      %v736 = vpop.f32.mrf.mxu0
      %v737 = vpop.f32.mrf.mxu0
      %738 = vdwg.mxu0
      %v739 = vmul.f32 %v734, %v734
      %v740 = vmul.f32 %v734, %v739
      %v741 = vmul.f32 %v740, 0.044715
      %v742 = vadd.f32 %v734, %v741
      %v743 = vmul.f32 %v742, 0.7978846
      %v744 = vtanh.pop %v743
      %v745 = vadd.f32 %v744, 1.0
      %v746 = vmul.f32 %v745, 0.5
      %v747 = vmul.f32 %v734, %v746
      %v748 = vpack.c.bf16 %v747, %v747
      %v749 = vld [vmem:[%s7] sm:$0xf]
      %v750 = vld [vmem:[%s7 + $0x4] sm:$0xf]
      %v751 = vld [vmem:[%s7 + $0x8] sm:$0xf]
      %v752 = vld [vmem:[%s7 + $0xc] sm:$0xf]
      %v753 = vld [vmem:[%s7 + $0x10] sm:$0xf]
      %v754 = vld [vmem:[%s7 + $0x14] sm:$0xf]
      %v755 = vld [vmem:[%s7 + $0x18] sm:$0xf]
      %v756 = vld [vmem:[%s7 + $0x1c] sm:$0xf]
      %v765 = vunpack.c.l.b16 %v749
      %v766 = vunpack.c.l.b16 %v750
      %v767 = vunpack.c.l.b16 %v751
      %v768 = vunpack.c.l.b16 %v752
      %v769 = vunpack.c.l.b16 %v753
      %v770 = vunpack.c.l.b16 %v754
      %v771 = vunpack.c.l.b16 %v755
      %v772 = vunpack.c.l.b16 %v756
      %v773 = vpack.c.b16 %v766, %v765
      %v774 = vpack.c.b16 %v768, %v767
      %v775 = vpack.c.b16 %v770, %v769
      %v776 = vpack.c.b16 %v772, %v771
      %vm781 = vcmask 523264
      %v783 = vsel %vm781, %v748, 0
      %785 = vmatprep.subr.bf16.mxu0 0
      %786 = vmatpush1.bf16.msra.mxu0 0
      %787 = vmatprep.subr.bf16.mxu0 0
      %788 = vmatpush1.bf16.msra.mxu0 0
      %789 = vmatprep.subr.bf16.mxu0 0
      %790 = vmatpush1.bf16.msra.mxu0 0
      %791 = vmatprep.subr.bf16.mxu0 0
      %792 = vmatpush1.bf16.msra.mxu0 0
      %793 = vmatprep.subr.bf16.mxu0 0
      %794 = vmatpush1.bf16.msra.mxu0 %v776
      %795 = vmatprep.subr.bf16.mxu0 0
      %796 = vmatpush1.bf16.msra.mxu0 %v775
      %797 = vmatprep.subr.bf16.mxu0 0
      %798 = vmatpush1.bf16.msra.mxu0 %v774
      %799 = vmatprep.subr.bf16.mxu0 0
      %800 = vmatpush1.bf16.msra.mxu0 %v773
      %801 = vmatprep.subr.bf16.mxu0 0
      %802 = vmatpush2.bf16.msra.mxu0 0
      %803 = vmatprep.subr.bf16.mxu0 0
      %804 = vmatpush2.bf16.msra.mxu0 0
      %805 = vmatprep.subr.bf16.mxu0 0
      %806 = vmatpush2.bf16.msra.mxu0 0
      %807 = vmatprep.subr.bf16.mxu0 0
      %808 = vmatpush2.bf16.msra.mxu0 0
      %809 = vmatprep.subr.bf16.mxu0 0
      %810 = vmatpush2.bf16.msra.mxu0 0
      %811 = vmatprep.subr.bf16.mxu0 0
      %812 = vmatpush2.bf16.msra.mxu0 0
      %813 = vmatprep.subr.bf16.mxu0 0
      %814 = vmatpush2.bf16.msra.mxu0 0
      %815 = vmatprep.subr.bf16.mxu0 0
      %816 = vmatpush2.bf16.msra.mxu0 0
      %817 = vmatprep.mubr.bf16.mxu0 0
      %818 = vmatmul.mubr.bf16.gmra.mxu0 %v783
      %v819 = vpop.f32.mrf.mxu0
      %v820 = vadd.f32 0.0, %v819
      %v821 = vpop.f32.mrf.mxu0
      %v822 = vpop.f32.mrf.mxu0
      %v823 = vpop.f32.mrf.mxu0
      %824 = vdwg.mxu0
      %v825 = vadd.f32 %v655, %v820
      %v826 = vsel %vm381, %v825, 0.0
      %827 = vadd.xlane.f32.xlu0 %v826
      %v828 = vpop.xlane.xlu0 %827
      %v829 = vmul.f32 %v828, %v385
      %v830 = vsub.f32 %v825, %v829
      %v831 = vmul.f32 %v830, %v830
      %v832 = vsel %vm381, %v831, 0.0
      %833 = vadd.xlane.f32.xlu0 %v832
      %v834 = vpop.xlane.xlu0 %833
      %v835 = vmul.f32 %v834, %v385
      %v836 = vadd.f32 %v835, 1e-05
      %v837 = vrsqrt.pop %v836
      %v838 = vmul.f32 %v830, %v837
      %v839 = vlaneseq
      %v840 = vshrl.u32 %v839, 7
      %v841 = vsub.s32 6, %v840
      %v842 = vrot.slane %v364, %v841
      %v843 = vmul.f32 %v838, %v842
      %v844 = vlaneseq
      %v845 = vshrl.u32 %v844, 7
      %v846 = vsub.s32 7, %v845
      %v847 = vrot.slane %v364, %v846
      %v848 = vadd.f32 %v843, %v847
      %v850 = vsel %vm526, %v363, 0
      %852 = vmatprep.subr.mxu0 0.0
      %853 = vmatpush1.msra.mxu0 0.0
      %854 = vmatprep.subr.mxu0 0.0
      %855 = vmatpush1.msra.mxu0 0.0
      %856 = vmatprep.subr.mxu0 0.0
      %857 = vmatpush1.msra.mxu0 0.0
      %858 = vmatprep.subr.mxu0 0.0
      %859 = vmatpush1.msra.mxu0 0.0
      %860 = vmatprep.subr.mxu0 0.0
      %861 = vmatpush1.msra.mxu0 0.0
      %862 = vmatprep.subr.mxu0 0.0
      %863 = vmatpush1.msra.mxu0 0.0
      %864 = vmatprep.subr.mxu0 0.0
      %865 = vmatpush1.msra.mxu0 0.0
      %866 = vmatprep.subr.mxu0 0.0
      %867 = vmatpush1.msra.mxu0 0.0
      %868 = vmatprep.subr.mxu0 0.0
      %869 = vmatpush1.msra.mxu0 0.0
      %870 = vmatprep.subr.mxu0 0.0
      %871 = vmatpush1.msra.mxu0 0.0
      %872 = vmatprep.subr.mxu0 0.0
      %873 = vmatpush1.msra.mxu0 0.0
      %874 = vmatprep.subr.mxu0 0.0
      %875 = vmatpush1.msra.mxu0 0.0
      %876 = vmatprep.subr.mxu0 0.0
      %877 = vmatpush1.msra.mxu0 0.0
      %878 = vmatprep.subr.mxu0 0.0
      %879 = vmatpush1.msra.mxu0 0.0
      %880 = vmatprep.subr.mxu0 0.0
      %881 = vmatpush1.msra.mxu0 0.0
      %882 = vmatprep.subr.mxu0 0.0
      %883 = vmatpush1.msra.mxu0 %v848
      %884 = vmatprep.subr.mxu0 0.0
      %885 = vmatpush2.msra.mxu0 0.0
      %886 = vmatprep.subr.mxu0 0.0
      %887 = vmatpush2.msra.mxu0 0.0
      %888 = vmatprep.subr.mxu0 0.0
      %889 = vmatpush2.msra.mxu0 0.0
      %890 = vmatprep.subr.mxu0 0.0
      %891 = vmatpush2.msra.mxu0 0.0
      %892 = vmatprep.subr.mxu0 0.0
      %893 = vmatpush2.msra.mxu0 0.0
      %894 = vmatprep.subr.mxu0 0.0
      %895 = vmatpush2.msra.mxu0 0.0
      %896 = vmatprep.subr.mxu0 0.0
      %897 = vmatpush2.msra.mxu0 0.0
      %898 = vmatprep.subr.mxu0 0.0
      %899 = vmatpush2.msra.mxu0 0.0
      %900 = vmatprep.subr.mxu0 0.0
      %901 = vmatpush2.msra.mxu0 0.0
      %902 = vmatprep.subr.mxu0 0.0
      %903 = vmatpush2.msra.mxu0 0.0
      %904 = vmatprep.subr.mxu0 0.0
      %905 = vmatpush2.msra.mxu0 0.0
      %906 = vmatprep.subr.mxu0 0.0
      %907 = vmatpush2.msra.mxu0 0.0
      %908 = vmatprep.subr.mxu0 0.0
      %909 = vmatpush2.msra.mxu0 0.0
      %910 = vmatprep.subr.mxu0 0.0
      %911 = vmatpush2.msra.mxu0 0.0
      %912 = vmatprep.subr.mxu0 0.0
      %913 = vmatpush2.msra.mxu0 0.0
      %914 = vmatprep.subr.mxu0 0.0
      %915 = vmatpush2.msra.mxu0 0.0
      %916 = vmatprep.mubr.f32.mxu0 0.0
      %917 = vmatmul.mubr.f32.gmra.mxu0 %v850
      %v918 = vpop.f32.mrf.mxu0
      %v919 = vadd.f32 0.0, %v918
      %v920 = vpop.f32.mrf.mxu0
      %921 = vdwg.mxu0
      %vm922 = vcmask 57344
      %v923 = vsel %vm922, %v363, 0.0
      %924 = vadd.xlane.f32.xlu0 %v923
      %v925 = vpop.xlane.xlu0 %924
      %v926 = vmax.f32 %v925, 0.001
      %v927 = vrcp.pop %v926
      %v928 = vmul.f32 %v919, %v927
      %vm929 = vcmp.eq.f32.partialorder %v925, 0.0
      %v930 = vsel %vm929, 1, 0
      %vm931 = vcmp.eq.s32.totalorder %v930, 1
      %v932 = vsel %vm931, 0.0, %v928
      %v933 = vld [vmem:[%s8] sm:$0x1]
      %v934 = vmul.f32 %v932, %v933
      %vm935 = vcmask 253952
      %v936 = vsel %vm935, %v934, 0.0
      %937 = vadd.xlane.f32.xlu0 %v936
      %v938 = vpop.xlane.xlu0 %937
      %v939 = vlaneseq
      %v940 = vshrl.u32 %v939, 7
      %v941 = vsub.s32 0, %v940
      %v942 = vrot.slane %v938, %v941
      %943 = vst [vmem:[%s358] sm:$0xff] %v942
      %p944 = scmp.lt.s32.totalorder %s20, 1
      %s945 = scalar_select %p944, %s20, 1
      %s946 = smul.addr %s945, 8
      %s947 = scalar_lea.vmem %s9, %s946
      // Predicated region
      $region57: #{reward_model_forward.1} parent=55 // pred_check
        %p948 = pneg %p242
      $region58: #{reward_model_forward.1} parent=55 // pred_check_branch
        %950 = sbr.rel (%p948) target = $region60
      $region59: #{reward_model_forward.1} parent=55 // pred_region
        _
      $region60: #{reward_model_forward.1} parent=55 // pred_fallthru
        _
    $region56: #{reward_model_forward.1} parent=5 // pred_fallthru
      _
    %p951 = scmp.le.s32.totalorder 2, %s15
    // Predicated region
    $region61: #{reward_model_forward.1} parent=5 // pred_check
      %p952 = pneg %p951
    $region62: #{reward_model_forward.1} parent=5 // pred_check_branch
      %954 = sbr.rel (%p952) target = $region64
    $region63: #{reward_model_forward.1} parent=5 // pred_region
      %s955 = ssub.s32 %s15, 2
      // Predicated region
      $region65: #{reward_model_forward.1} parent=63 // pred_check
        %p956 = pneg %p248
      $region66: #{reward_model_forward.1} parent=63 // pred_check_branch
        %958 = sbr.rel (%p956) target = $region68
      $region67: #{reward_model_forward.1} parent=63 // pred_region
        %p959 = scmp.lt.s32.totalorder %s21, 1
        %s960 = scalar_select %p959, %s21, 1
        %s961 = smul.addr %s960, 8
        %s962 = scalar_lea.vmem %s9, %s961
      $region68: #{reward_model_forward.1} parent=63 // pred_fallthru
        _
    $region64: #{reward_model_forward.1} parent=5 // pred_fallthru
      _
  $region6: #{reward_model_forward.1} parent=0 // loop_footer
    %s19 = sadd.s32 1, %s15
  $region7: #{reward_model_forward.1} parent=0 // loop_footer_branch
    %14 = sbr.rel target = $region3
  $region8: #{reward_model_forward.1} parent=0 // loop_exit
    _

</llo_original>
